<compile_context>
chip_gen: v7x
topology: tpu7x:2x2x1
jax: 0.10.0
libtpu: 0.0.40
codegen_flags: <defaults>
</compile_context>

<pallas_src>
import math
import functools

import jax
import jax.numpy as jnp
from jax import lax
from jax.experimental import pallas as pl
from jax.experimental.pallas import tpu as pltpu

LN_EPS = 1e-5  # PyTorch nn.LayerNorm default


# ---------------------------------------------------------------------------
# Kernels
# ---------------------------------------------------------------------------
def _attn_sublayer_kernel(x_ref, kv_ref, mask_ref,
                          wq_ref, bq_ref, wk_ref, bk_ref, wv_ref, bv_ref,
                          wo_ref, bo_ref, gamma_ref, beta_ref,
                          o_ref, *, n_heads, d_k, eps):
    """out = LayerNorm(x + MHA(x, kv, kv, mask)) for one batch element."""
    x = x_ref[0].astype(jnp.float32)       # (Sq, D)
    kv = kv_ref[0].astype(jnp.float32)     # (Sk, D)
    mask = mask_ref[...]                   # (Sq, Sk), 1.0 = attend, 0.0 = masked

    q = jnp.dot(x, wq_ref[...], preferred_element_type=jnp.float32) + bq_ref[...]
    k = jnp.dot(kv, wk_ref[...], preferred_element_type=jnp.float32) + bk_ref[...]
    v = jnp.dot(kv, wv_ref[...], preferred_element_type=jnp.float32) + bv_ref[...]
    wo = wo_ref[...]                       # (D, D)

    scale = 1.0 / math.sqrt(d_k)
    proj = jnp.zeros_like(x)               # accumulates attn_heads @ Wo
    for h in range(n_heads):               # static unroll over heads
        sl = slice(h * d_k, (h + 1) * d_k)
        qs, ks, vs = q[:, sl], k[:, sl], v[:, sl]
        # scores = qs @ ks^T / sqrt(d_k)
        s = lax.dot_general(qs, ks, (((1,), (1,)), ((), ())),
                            preferred_element_type=jnp.float32) * scale
        s = jnp.where(mask > 0.0, s, -1e9)
        s = s - jnp.max(s, axis=-1, keepdims=True)
        p = jnp.exp(s)
        p = p * pl.reciprocal(jnp.sum(p, axis=-1, keepdims=True), approx=False)
        head = jnp.dot(p, vs, preferred_element_type=jnp.float32)       # (Sq, d_k)
        # concat(head_0..head_{H-1}) @ Wo == sum_h head_h @ Wo[h*d_k:(h+1)*d_k, :]
        proj = proj + jnp.dot(head, wo[sl, :],
                              preferred_element_type=jnp.float32)

    y = x + proj + bo_ref[...]             # residual (dropout = identity)
    mu = jnp.mean(y, axis=-1, keepdims=True)
    var = jnp.mean((y - mu) ** 2, axis=-1, keepdims=True)
    y_hat = (y - mu) * lax.rsqrt(var + eps)
    o_ref[0] = (y_hat * gamma_ref[...] + beta_ref[...]).astype(o_ref.dtype)


def _ffn_sublayer_kernel(x_ref, w1_ref, b1_ref, w2_ref, b2_ref,
                         gamma_ref, beta_ref, o_ref, *, eps):
    """out = LayerNorm(x + W2 @ relu(W1 @ x + b1) + b2) for one batch element."""
    x = x_ref[0].astype(jnp.float32)       # (S, D)
    hdn = jnp.dot(x, w1_ref[...], preferred_element_type=jnp.float32) + b1_ref[...]
    hdn = jnp.maximum(hdn, 0.0)
    f = jnp.dot(hdn, w2_ref[...], preferred_element_type=jnp.float32) + b2_ref[...]
    y = x + f                              # residual (dropout = identity)
    mu = jnp.mean(y, axis=-1, keepdims=True)
    var = jnp.mean((y - mu) ** 2, axis=-1, keepdims=True)
    y_hat = (y - mu) * lax.rsqrt(var + eps)
    o_ref[0] = (y_hat * gamma_ref[...] + beta_ref[...]).astype(o_ref.dtype)


# ---------------------------------------------------------------------------
# Wrappers
# ---------------------------------------------------------------------------
def _full_spec(shape):
    """BlockSpec covering the whole array, constant across the batch grid."""
    nd = len(shape)
    return pl.BlockSpec(shape, lambda b, _nd=nd: (0,) * _nd)


def attention_sublayer(x, kv, mask, params, ln, *, n_heads):
    """LayerNorm(x + MultiHeadAttention(x, kv, kv, mask)); grid over batch."""
    B, Sq, D = x.shape
    _, Sk, _ = kv.shape
    assert D % n_heads == 0
    d_k = D // n_heads
    wq, bq, wk, bk, wv, bv, wo, bo = params
    gamma, beta = ln

    kernel = functools.partial(_attn_sublayer_kernel,
                               n_heads=n_heads, d_k=d_k, eps=LN_EPS)
    return pl.pallas_call(
        kernel,
        out_shape=jax.ShapeDtypeStruct((B, Sq, D), x.dtype),
        grid_spec=pltpu.PrefetchScalarGridSpec(
            num_scalar_prefetch=0,
            grid=(B,),
            in_specs=[
                pl.BlockSpec((1, Sq, D), lambda b: (b, 0, 0)),   # x
                pl.BlockSpec((1, Sk, D), lambda b: (b, 0, 0)),   # kv (x or memory)
                _full_spec(mask.shape),
                _full_spec(wq.shape), _full_spec(bq.shape),
                _full_spec(wk.shape), _full_spec(bk.shape),
                _full_spec(wv.shape), _full_spec(bv.shape),
                _full_spec(wo.shape), _full_spec(bo.shape),
                _full_spec(gamma.shape), _full_spec(beta.shape),
            ],
            out_specs=pl.BlockSpec((1, Sq, D), lambda b: (b, 0, 0)),
        ),
        compiler_params=pltpu.CompilerParams(
            dimension_semantics=("parallel",)),
    )(x, kv, mask, wq, bq, wk, bk, wv, bv, wo, bo, gamma, beta)


def ffn_sublayer(x, params, ln):
    """LayerNorm(x + PositionwiseFeedForward(x)); grid over batch."""
    B, S, D = x.shape
    w1, b1, w2, b2 = params
    gamma, beta = ln

    kernel = functools.partial(_ffn_sublayer_kernel, eps=LN_EPS)
    return pl.pallas_call(
        kernel,
        out_shape=jax.ShapeDtypeStruct((B, S, D), x.dtype),
        grid_spec=pltpu.PrefetchScalarGridSpec(
            num_scalar_prefetch=0,
            grid=(B,),
            in_specs=[
                pl.BlockSpec((1, S, D), lambda b: (b, 0, 0)),
                _full_spec(w1.shape), _full_spec(b1.shape),
                _full_spec(w2.shape), _full_spec(b2.shape),
                _full_spec(gamma.shape), _full_spec(beta.shape),
            ],
            out_specs=pl.BlockSpec((1, S, D), lambda b: (b, 0, 0)),
        ),
        compiler_params=pltpu.CompilerParams(
            dimension_semantics=("parallel",)),
    )(x, w1, b1, w2, b2, gamma, beta)


def decoder_layer_forward(x, memory, src_mask, tgt_mask, params, *, n_heads):
    """Pallas implementation of DecoderLayer.forward (eval mode)."""
    B, S, D = x.shape
    _, Sm, _ = memory.shape
    tgt_m = jnp.broadcast_to(tgt_mask.astype(jnp.float32), (S, S))
    src_m = jnp.broadcast_to(src_mask.astype(jnp.float32), (S, Sm))
    x = attention_sublayer(x, x, tgt_m, params["self_attn"], params["ln0"],
                           n_heads=n_heads)
    x = attention_sublayer(x, memory, src_m, params["src_attn"], params["ln1"],
                           n_heads=n_heads)
    return ffn_sublayer(x, params["ffn"], params["ln2"])


# ---------------------------------------------------------------------------
# Pure-JAX reference (mirrors the PyTorch module semantics)
# ---------------------------------------------------------------------------
def _ref_ln(y, gamma, beta):
    mu = y.mean(-1, keepdims=True)
    var = ((y - mu) ** 2).mean(-1, keepdims=True)
    return (y - mu) / jnp.sqrt(var + LN_EPS) * gamma + beta


def _ref_mha(q_in, kv_in, mask, params, n_heads):
    wq, bq, wk, bk, wv, bv, wo, bo = params
    B, Sq, D = q_in.shape
    Sk = kv_in.shape[1]
    dk = D // n_heads
    q = (q_in @ wq + bq).reshape(B, Sq, n_heads, dk).transpose(0, 2, 1, 3)
    k = (kv_in @ wk + bk).reshape(B, Sk, n_heads, dk).transpose(0, 2, 1, 3)
    v = (kv_in @ wv + bv).reshape(B, Sk, n_heads, dk).transpose(0, 2, 1, 3)
    s = jnp.einsum("bhqd,bhkd->bhqk", q, k) / math.sqrt(dk)
    s = jnp.where(mask[None, None] > 0, s, -1e9)
    p = jax.nn.softmax(s, axis=-1)
    o = jnp.einsum("bhqk,bhkd->bhqd", p, v).transpose(0, 2, 1, 3).reshape(B, Sq, D)
    return o @ wo + bo


def _ref_decoder_layer(x, memory, src_mask, tgt_mask, params, n_heads):
    S = x.shape[1]
    Sm = memory.shape[1]
    tgt_m = jnp.broadcast_to(tgt_mask.astype(jnp.float32), (S, S))
    src_m = jnp.broadcast_to(src_mask.astype(jnp.float32), (S, Sm))
    x = _ref_ln(x + _ref_mha(x, x, tgt_m, params["self_attn"], n_heads),
                *params["ln0"])
    x = _ref_ln(x + _ref_mha(x, memory, src_m, params["src_attn"], n_heads),
                *params["ln1"])
    w1, b1, w2, b2 = params["ffn"]
    f = jnp.maximum(x @ w1 + b1, 0.0) @ w2 + b2
    return _ref_ln(x + f, *params["ln2"])


# ---------------------------------------------------------------------------
# Test
# ---------------------------------------------------------------------------
if __name__ == "__main__":
    key = jax.random.PRNGKey(0)
    B, S, SM, D, H, DFF = 2, 8, 16, 32, 4, 64   # batch, tgt seq, src seq, d_model, heads, d_ff

    ks = jax.random.split(key, 16)

    def nrm(k, shape, scale=0.1):
        return scale * jax.random.normal(k, shape, dtype=jnp.float32)

    x = nrm(ks[0], (B, S, D), 1.0)
    memory = nrm(ks[1], (B, SM, D), 1.0)

    def attn_params(k):
        sub = jax.random.split(k, 8)
        return (nrm(sub[0], (D, D)), nrm(sub[1], (1, D)),
                nrm(sub[2], (D, D)), nrm(sub[3], (1, D)),
                nrm(sub[4], (D, D)), nrm(sub[5], (1, D)),
                nrm(sub[6], (D, D)), nrm(sub[7], (1, D)))

    params = {
        "self_attn": attn_params(ks[2]),
        "src_attn": attn_params(ks[3]),
        "ffn": (nrm(ks[4], (D, DFF)), nrm(ks[5], (1, DFF)),
                nrm(ks[6], (DFF, D)), nrm(ks[7], (1, D))),
        "ln0": (1.0 + nrm(ks[8], (1, D)), nrm(ks[9], (1, D))),
        "ln1": (1.0 + nrm(ks[10], (1, D)), nrm(ks[11], (1, D))),
        "ln2": (1.0 + nrm(ks[12], (1, D)), nrm(ks[13], (1, D))),
    }

    tgt_mask = jnp.tril(jnp.ones((S, S), dtype=jnp.float32))   # causal mask
    src_mask = jnp.ones((1, SM), dtype=jnp.float32)            # attend everywhere

    out = decoder_layer_forward(x, memory, src_mask, tgt_mask, params, n_heads=H)
    out = jax.block_until_ready(out)

    ref = _ref_decoder_layer(x, memory, src_mask, tgt_mask, params, H)
    assert out.shape == (B, S, D)
    assert out.dtype == jnp.float32
    assert jnp.allclose(out, ref, atol=1e-4, rtol=1e-4), float(jnp.max(jnp.abs(out - ref)))

    print("KERNEL_OK")
</pallas_src>

<mosaic_0001>
module attributes {stable_mosaic.version = 11 : i64} {
  func.func @_attn_sublayer_kernel(%arg0: i32, %arg1: memref<1x8x32xf32, #tpu.memory_space<vmem>>, %arg2: memref<1x8x32xf32, #tpu.memory_space<vmem>>, %arg3: memref<8x8xf32, #tpu.memory_space<vmem>>, %arg4: memref<32x32xf32, #tpu.memory_space<vmem>>, %arg5: memref<1x32xf32, #tpu.memory_space<vmem>>, %arg6: memref<32x32xf32, #tpu.memory_space<vmem>>, %arg7: memref<1x32xf32, #tpu.memory_space<vmem>>, %arg8: memref<32x32xf32, #tpu.memory_space<vmem>>, %arg9: memref<1x32xf32, #tpu.memory_space<vmem>>, %arg10: memref<32x32xf32, #tpu.memory_space<vmem>>, %arg11: memref<1x32xf32, #tpu.memory_space<vmem>>, %arg12: memref<1x32xf32, #tpu.memory_space<vmem>>, %arg13: memref<1x32xf32, #tpu.memory_space<vmem>>, %arg14: memref<1x8x32xf32, #tpu.memory_space<vmem>>) attributes {dimension_semantics = [#tpu.dimension_semantics<parallel>], iteration_bounds = array<i64: 2>, scalar_prefetch = 0 : i64, scratch_operands = 0 : i64, tpu.core_type = #tpu.core_type<tc>, window_params = [{transform_indices = @transform_0, window_bounds = array<i64: 1, 8, 32>}, {transform_indices = @transform_1, window_bounds = array<i64: 1, 8, 32>}, {pipeline_mode = #tpu.pipeline_mode<synchronous>, transform_indices = @transform_2, window_bounds = array<i64: 8, 8>}, {pipeline_mode = #tpu.pipeline_mode<synchronous>, transform_indices = @transform_3, window_bounds = array<i64: 32, 32>}, {pipeline_mode = #tpu.pipeline_mode<synchronous>, transform_indices = @transform_4, window_bounds = array<i64: 1, 32>}, {pipeline_mode = #tpu.pipeline_mode<synchronous>, transform_indices = @transform_5, window_bounds = array<i64: 32, 32>}, {pipeline_mode = #tpu.pipeline_mode<synchronous>, transform_indices = @transform_6, window_bounds = array<i64: 1, 32>}, {pipeline_mode = #tpu.pipeline_mode<synchronous>, transform_indices = @transform_7, window_bounds = array<i64: 32, 32>}, {pipeline_mode = #tpu.pipeline_mode<synchronous>, transform_indices = @transform_8, window_bounds = array<i64: 1, 32>}, {pipeline_mode = #tpu.pipeline_mode<synchronous>, transform_indices = @transform_9, window_bounds = array<i64: 32, 32>}, {pipeline_mode = #tpu.pipeline_mode<synchronous>, transform_indices = @transform_10, window_bounds = array<i64: 1, 32>}, {pipeline_mode = #tpu.pipeline_mode<synchronous>, transform_indices = @transform_11, window_bounds = array<i64: 1, 32>}, {pipeline_mode = #tpu.pipeline_mode<synchronous>, transform_indices = @transform_12, window_bounds = array<i64: 1, 32>}, {transform_indices = @transform_13, window_bounds = array<i64: 1, 8, 32>}]} {
    %c0 = arith.constant 0 : index
    %c0_0 = arith.constant 0 : index
    %c0_1 = arith.constant 0 : index
    %0 = vector.load %arg1[%c0, %c0_0, %c0_1] : memref<1x8x32xf32, #tpu.memory_space<vmem>>, vector<1x8x32xf32>
    %1 = vector.shape_cast %0 : vector<1x8x32xf32> to vector<8x32xf32>
    %c0_2 = arith.constant 0 : index
    %c0_3 = arith.constant 0 : index
    %c0_4 = arith.constant 0 : index
    %2 = vector.load %arg2[%c0_2, %c0_3, %c0_4] : memref<1x8x32xf32, #tpu.memory_space<vmem>>, vector<1x8x32xf32>
    %3 = vector.shape_cast %2 : vector<1x8x32xf32> to vector<8x32xf32>
    %c0_5 = arith.constant 0 : index
    %c0_6 = arith.constant 0 : index
    %4 = vector.load %arg3[%c0_5, %c0_6] : memref<8x8xf32, #tpu.memory_space<vmem>>, vector<8x8xf32>
    %c0_7 = arith.constant 0 : index
    %c0_8 = arith.constant 0 : index
    %5 = vector.load %arg4[%c0_7, %c0_8] : memref<32x32xf32, #tpu.memory_space<vmem>>, vector<32x32xf32>
    %cst = arith.constant dense<0.000000e+00> : vector<8x32xf32>
    %6 = tpu.matmul %1, %5, %cst {dimension_numbers = #tpu.dot_dimension_numbers<[1], [0], [0], [1], [0, 0, 1, 1], [], []>} : vector<8x32xf32>, vector<32x32xf32>, vector<8x32xf32> -> vector<8x32xf32>
    %c0_9 = arith.constant 0 : index
    %c0_10 = arith.constant 0 : index
    %7 = vector.load %arg5[%c0_9, %c0_10] : memref<1x32xf32, #tpu.memory_space<vmem>>, vector<1x32xf32>
    %8 = vector.broadcast %7 : vector<1x32xf32> to vector<8x32xf32>
    %9 = arith.addf %6, %8 : vector<8x32xf32>
    %c0_11 = arith.constant 0 : index
    %c0_12 = arith.constant 0 : index
    %10 = vector.load %arg6[%c0_11, %c0_12] : memref<32x32xf32, #tpu.memory_space<vmem>>, vector<32x32xf32>
    %cst_13 = arith.constant dense<0.000000e+00> : vector<8x32xf32>
    %11 = tpu.matmul %3, %10, %cst_13 {dimension_numbers = #tpu.dot_dimension_numbers<[1], [0], [0], [1], [0, 0, 1, 1], [], []>} : vector<8x32xf32>, vector<32x32xf32>, vector<8x32xf32> -> vector<8x32xf32>
    %c0_14 = arith.constant 0 : index
    %c0_15 = arith.constant 0 : index
    %12 = vector.load %arg7[%c0_14, %c0_15] : memref<1x32xf32, #tpu.memory_space<vmem>>, vector<1x32xf32>
    %13 = vector.broadcast %12 : vector<1x32xf32> to vector<8x32xf32>
    %14 = arith.addf %11, %13 : vector<8x32xf32>
    %c0_16 = arith.constant 0 : index
    %c0_17 = arith.constant 0 : index
    %15 = vector.load %arg8[%c0_16, %c0_17] : memref<32x32xf32, #tpu.memory_space<vmem>>, vector<32x32xf32>
    %cst_18 = arith.constant dense<0.000000e+00> : vector<8x32xf32>
    %16 = tpu.matmul %3, %15, %cst_18 {dimension_numbers = #tpu.dot_dimension_numbers<[1], [0], [0], [1], [0, 0, 1, 1], [], []>} : vector<8x32xf32>, vector<32x32xf32>, vector<8x32xf32> -> vector<8x32xf32>
    %c0_19 = arith.constant 0 : index
    %c0_20 = arith.constant 0 : index
    %17 = vector.load %arg9[%c0_19, %c0_20] : memref<1x32xf32, #tpu.memory_space<vmem>>, vector<1x32xf32>
    %18 = vector.broadcast %17 : vector<1x32xf32> to vector<8x32xf32>
    %19 = arith.addf %16, %18 : vector<8x32xf32>
    %c0_21 = arith.constant 0 : index
    %c0_22 = arith.constant 0 : index
    %20 = vector.load %arg10[%c0_21, %c0_22] : memref<32x32xf32, #tpu.memory_space<vmem>>, vector<32x32xf32>
    %cst_23 = arith.constant 0.000000e+00 : f32
    %21 = vector.broadcast %cst_23 : f32 to vector<8x32xf32>
    %22 = vector.extract_strided_slice %9 {offsets = [0, 0], sizes = [8, 8], strides = [1, 1]} : vector<8x32xf32> to vector<8x8xf32>
    %23 = vector.extract_strided_slice %14 {offsets = [0, 0], sizes = [8, 8], strides = [1, 1]} : vector<8x32xf32> to vector<8x8xf32>
    %24 = vector.extract_strided_slice %19 {offsets = [0, 0], sizes = [8, 8], strides = [1, 1]} : vector<8x32xf32> to vector<8x8xf32>
    %cst_24 = arith.constant dense<0.000000e+00> : vector<8x8xf32>
    %25 = tpu.matmul %22, %23, %cst_24 {dimension_numbers = #tpu.dot_dimension_numbers<[1], [1], [0], [0], [0, 0, 1, 0], [], []>} : vector<8x8xf32>, vector<8x8xf32>, vector<8x8xf32> -> vector<8x8xf32>
    %cst_25 = arith.constant 0.353553385 : f32
    %26 = vector.broadcast %cst_25 : f32 to vector<8x8xf32>
    %27 = arith.mulf %25, %26 : vector<8x8xf32>
    %cst_26 = arith.constant 0.000000e+00 : f32
    %28 = vector.broadcast %cst_26 : f32 to vector<8x8xf32>
    %29 = arith.cmpf ogt, %4, %28 : vector<8x8xf32>
    %cst_27 = arith.constant -1.000000e+09 : f32
    %30 = vector.broadcast %cst_27 : f32 to vector<8x8xf32>
    %31 = arith.select %29, %27, %30 : vector<8x8xi1>, vector<8x8xf32>
    %cst_28 = arith.constant dense<0xFF800000> : vector<8xf32>
    %32 = vector.multi_reduction <maximumf>, %31, %cst_28 [1] : vector<8x8xf32> to vector<8xf32>
    %33 = vector.shape_cast %32 : vector<8xf32> to vector<8x1xf32>
    %34 = vector.broadcast %33 : vector<8x1xf32> to vector<8x8xf32>
    %35 = arith.subf %31, %34 : vector<8x8xf32>
    %36 = math.exp %35 : vector<8x8xf32>
    %cst_29 = arith.constant dense<0.000000e+00> : vector<8xf32>
    %37 = vector.multi_reduction <add>, %36, %cst_29 [1] : vector<8x8xf32> to vector<8xf32>
    %38 = vector.shape_cast %37 : vector<8xf32> to vector<8x1xf32>
    %39 = tpu.reciprocal %38 : vector<8x1xf32> -> vector<8x1xf32>
    %40 = vector.broadcast %39 : vector<8x1xf32> to vector<8x8xf32>
    %41 = arith.mulf %36, %40 : vector<8x8xf32>
    %cst_30 = arith.constant dense<0.000000e+00> : vector<8x8xf32>
    %42 = tpu.matmul %41, %24, %cst_30 {dimension_numbers = #tpu.dot_dimension_numbers<[1], [0], [0], [1], [0, 0, 1, 1], [], []>} : vector<8x8xf32>, vector<8x8xf32>, vector<8x8xf32> -> vector<8x8xf32>
    %43 = vector.extract_strided_slice %20 {offsets = [0, 0], sizes = [8, 32], strides = [1, 1]} : vector<32x32xf32> to vector<8x32xf32>
    %cst_31 = arith.constant dense<0.000000e+00> : vector<8x32xf32>
    %44 = tpu.matmul %42, %43, %cst_31 {dimension_numbers = #tpu.dot_dimension_numbers<[1], [0], [0], [1], [0, 0, 1, 1], [], []>} : vector<8x8xf32>, vector<8x32xf32>, vector<8x32xf32> -> vector<8x32xf32>
    %45 = arith.addf %21, %44 : vector<8x32xf32>
    %46 = vector.extract_strided_slice %9 {offsets = [0, 8], sizes = [8, 8], strides = [1, 1]} : vector<8x32xf32> to vector<8x8xf32>
    %47 = vector.extract_strided_slice %14 {offsets = [0, 8], sizes = [8, 8], strides = [1, 1]} : vector<8x32xf32> to vector<8x8xf32>
    %48 = vector.extract_strided_slice %19 {offsets = [0, 8], sizes = [8, 8], strides = [1, 1]} : vector<8x32xf32> to vector<8x8xf32>
    %cst_32 = arith.constant dense<0.000000e+00> : vector<8x8xf32>
    %49 = tpu.matmul %46, %47, %cst_32 {dimension_numbers = #tpu.dot_dimension_numbers<[1], [1], [0], [0], [0, 0, 1, 0], [], []>} : vector<8x8xf32>, vector<8x8xf32>, vector<8x8xf32> -> vector<8x8xf32>
    %cst_33 = arith.constant 0.353553385 : f32
    %50 = vector.broadcast %cst_33 : f32 to vector<8x8xf32>
    %51 = arith.mulf %49, %50 : vector<8x8xf32>
    %cst_34 = arith.constant 0.000000e+00 : f32
    %52 = vector.broadcast %cst_34 : f32 to vector<8x8xf32>
    %53 = arith.cmpf ogt, %4, %52 : vector<8x8xf32>
    %cst_35 = arith.constant -1.000000e+09 : f32
    %54 = vector.broadcast %cst_35 : f32 to vector<8x8xf32>
    %55 = arith.select %53, %51, %54 : vector<8x8xi1>, vector<8x8xf32>
    %cst_36 = arith.constant dense<0xFF800000> : vector<8xf32>
    %56 = vector.multi_reduction <maximumf>, %55, %cst_36 [1] : vector<8x8xf32> to vector<8xf32>
    %57 = vector.shape_cast %56 : vector<8xf32> to vector<8x1xf32>
    %58 = vector.broadcast %57 : vector<8x1xf32> to vector<8x8xf32>
    %59 = arith.subf %55, %58 : vector<8x8xf32>
    %60 = math.exp %59 : vector<8x8xf32>
    %cst_37 = arith.constant dense<0.000000e+00> : vector<8xf32>
    %61 = vector.multi_reduction <add>, %60, %cst_37 [1] : vector<8x8xf32> to vector<8xf32>
    %62 = vector.shape_cast %61 : vector<8xf32> to vector<8x1xf32>
    %63 = tpu.reciprocal %62 : vector<8x1xf32> -> vector<8x1xf32>
    %64 = vector.broadcast %63 : vector<8x1xf32> to vector<8x8xf32>
    %65 = arith.mulf %60, %64 : vector<8x8xf32>
    %cst_38 = arith.constant dense<0.000000e+00> : vector<8x8xf32>
    %66 = tpu.matmul %65, %48, %cst_38 {dimension_numbers = #tpu.dot_dimension_numbers<[1], [0], [0], [1], [0, 0, 1, 1], [], []>} : vector<8x8xf32>, vector<8x8xf32>, vector<8x8xf32> -> vector<8x8xf32>
    %67 = vector.extract_strided_slice %20 {offsets = [8, 0], sizes = [8, 32], strides = [1, 1]} : vector<32x32xf32> to vector<8x32xf32>
    %cst_39 = arith.constant dense<0.000000e+00> : vector<8x32xf32>
    %68 = tpu.matmul %66, %67, %cst_39 {dimension_numbers = #tpu.dot_dimension_numbers<[1], [0], [0], [1], [0, 0, 1, 1], [], []>} : vector<8x8xf32>, vector<8x32xf32>, vector<8x32xf32> -> vector<8x32xf32>
    %69 = arith.addf %45, %68 : vector<8x32xf32>
    %70 = vector.extract_strided_slice %9 {offsets = [0, 16], sizes = [8, 8], strides = [1, 1]} : vector<8x32xf32> to vector<8x8xf32>
    %71 = vector.extract_strided_slice %14 {offsets = [0, 16], sizes = [8, 8], strides = [1, 1]} : vector<8x32xf32> to vector<8x8xf32>
    %72 = vector.extract_strided_slice %19 {offsets = [0, 16], sizes = [8, 8], strides = [1, 1]} : vector<8x32xf32> to vector<8x8xf32>
    %cst_40 = arith.constant dense<0.000000e+00> : vector<8x8xf32>
    %73 = tpu.matmul %70, %71, %cst_40 {dimension_numbers = #tpu.dot_dimension_numbers<[1], [1], [0], [0], [0, 0, 1, 0], [], []>} : vector<8x8xf32>, vector<8x8xf32>, vector<8x8xf32> -> vector<8x8xf32>
    %cst_41 = arith.constant 0.353553385 : f32
    %74 = vector.broadcast %cst_41 : f32 to vector<8x8xf32>
    %75 = arith.mulf %73, %74 : vector<8x8xf32>
    %cst_42 = arith.constant 0.000000e+00 : f32
    %76 = vector.broadcast %cst_42 : f32 to vector<8x8xf32>
    %77 = arith.cmpf ogt, %4, %76 : vector<8x8xf32>
    %cst_43 = arith.constant -1.000000e+09 : f32
    %78 = vector.broadcast %cst_43 : f32 to vector<8x8xf32>
    %79 = arith.select %77, %75, %78 : vector<8x8xi1>, vector<8x8xf32>
    %cst_44 = arith.constant dense<0xFF800000> : vector<8xf32>
    %80 = vector.multi_reduction <maximumf>, %79, %cst_44 [1] : vector<8x8xf32> to vector<8xf32>
    %81 = vector.shape_cast %80 : vector<8xf32> to vector<8x1xf32>
    %82 = vector.broadcast %81 : vector<8x1xf32> to vector<8x8xf32>
    %83 = arith.subf %79, %82 : vector<8x8xf32>
    %84 = math.exp %83 : vector<8x8xf32>
    %cst_45 = arith.constant dense<0.000000e+00> : vector<8xf32>
    %85 = vector.multi_reduction <add>, %84, %cst_45 [1] : vector<8x8xf32> to vector<8xf32>
    %86 = vector.shape_cast %85 : vector<8xf32> to vector<8x1xf32>
    %87 = tpu.reciprocal %86 : vector<8x1xf32> -> vector<8x1xf32>
    %88 = vector.broadcast %87 : vector<8x1xf32> to vector<8x8xf32>
    %89 = arith.mulf %84, %88 : vector<8x8xf32>
    %cst_46 = arith.constant dense<0.000000e+00> : vector<8x8xf32>
    %90 = tpu.matmul %89, %72, %cst_46 {dimension_numbers = #tpu.dot_dimension_numbers<[1], [0], [0], [1], [0, 0, 1, 1], [], []>} : vector<8x8xf32>, vector<8x8xf32>, vector<8x8xf32> -> vector<8x8xf32>
    %91 = vector.extract_strided_slice %20 {offsets = [16, 0], sizes = [8, 32], strides = [1, 1]} : vector<32x32xf32> to vector<8x32xf32>
    %cst_47 = arith.constant dense<0.000000e+00> : vector<8x32xf32>
    %92 = tpu.matmul %90, %91, %cst_47 {dimension_numbers = #tpu.dot_dimension_numbers<[1], [0], [0], [1], [0, 0, 1, 1], [], []>} : vector<8x8xf32>, vector<8x32xf32>, vector<8x32xf32> -> vector<8x32xf32>
    %93 = arith.addf %69, %92 : vector<8x32xf32>
    %94 = vector.extract_strided_slice %9 {offsets = [0, 24], sizes = [8, 8], strides = [1, 1]} : vector<8x32xf32> to vector<8x8xf32>
    %95 = vector.extract_strided_slice %14 {offsets = [0, 24], sizes = [8, 8], strides = [1, 1]} : vector<8x32xf32> to vector<8x8xf32>
    %96 = vector.extract_strided_slice %19 {offsets = [0, 24], sizes = [8, 8], strides = [1, 1]} : vector<8x32xf32> to vector<8x8xf32>
    %cst_48 = arith.constant dense<0.000000e+00> : vector<8x8xf32>
    %97 = tpu.matmul %94, %95, %cst_48 {dimension_numbers = #tpu.dot_dimension_numbers<[1], [1], [0], [0], [0, 0, 1, 0], [], []>} : vector<8x8xf32>, vector<8x8xf32>, vector<8x8xf32> -> vector<8x8xf32>
    %cst_49 = arith.constant 0.353553385 : f32
    %98 = vector.broadcast %cst_49 : f32 to vector<8x8xf32>
    %99 = arith.mulf %97, %98 : vector<8x8xf32>
    %cst_50 = arith.constant 0.000000e+00 : f32
    %100 = vector.broadcast %cst_50 : f32 to vector<8x8xf32>
    %101 = arith.cmpf ogt, %4, %100 : vector<8x8xf32>
    %cst_51 = arith.constant -1.000000e+09 : f32
    %102 = vector.broadcast %cst_51 : f32 to vector<8x8xf32>
    %103 = arith.select %101, %99, %102 : vector<8x8xi1>, vector<8x8xf32>
    %cst_52 = arith.constant dense<0xFF800000> : vector<8xf32>
    %104 = vector.multi_reduction <maximumf>, %103, %cst_52 [1] : vector<8x8xf32> to vector<8xf32>
    %105 = vector.shape_cast %104 : vector<8xf32> to vector<8x1xf32>
    %106 = vector.broadcast %105 : vector<8x1xf32> to vector<8x8xf32>
    %107 = arith.subf %103, %106 : vector<8x8xf32>
    %108 = math.exp %107 : vector<8x8xf32>
    %cst_53 = arith.constant dense<0.000000e+00> : vector<8xf32>
    %109 = vector.multi_reduction <add>, %108, %cst_53 [1] : vector<8x8xf32> to vector<8xf32>
    %110 = vector.shape_cast %109 : vector<8xf32> to vector<8x1xf32>
    %111 = tpu.reciprocal %110 : vector<8x1xf32> -> vector<8x1xf32>
    %112 = vector.broadcast %111 : vector<8x1xf32> to vector<8x8xf32>
    %113 = arith.mulf %108, %112 : vector<8x8xf32>
    %cst_54 = arith.constant dense<0.000000e+00> : vector<8x8xf32>
    %114 = tpu.matmul %113, %96, %cst_54 {dimension_numbers = #tpu.dot_dimension_numbers<[1], [0], [0], [1], [0, 0, 1, 1], [], []>} : vector<8x8xf32>, vector<8x8xf32>, vector<8x8xf32> -> vector<8x8xf32>
    %115 = vector.extract_strided_slice %20 {offsets = [24, 0], sizes = [8, 32], strides = [1, 1]} : vector<32x32xf32> to vector<8x32xf32>
    %cst_55 = arith.constant dense<0.000000e+00> : vector<8x32xf32>
    %116 = tpu.matmul %114, %115, %cst_55 {dimension_numbers = #tpu.dot_dimension_numbers<[1], [0], [0], [1], [0, 0, 1, 1], [], []>} : vector<8x8xf32>, vector<8x32xf32>, vector<8x32xf32> -> vector<8x32xf32>
    %117 = arith.addf %93, %116 : vector<8x32xf32>
    %118 = arith.addf %1, %117 : vector<8x32xf32>
    %c0_56 = arith.constant 0 : index
    %c0_57 = arith.constant 0 : index
    %119 = vector.load %arg11[%c0_56, %c0_57] : memref<1x32xf32, #tpu.memory_space<vmem>>, vector<1x32xf32>
    %120 = vector.broadcast %119 : vector<1x32xf32> to vector<8x32xf32>
    %121 = arith.addf %118, %120 : vector<8x32xf32>
    %cst_58 = arith.constant dense<0.000000e+00> : vector<8xf32>
    %122 = vector.multi_reduction <add>, %121, %cst_58 [1] : vector<8x32xf32> to vector<8xf32>
    %123 = vector.shape_cast %122 : vector<8xf32> to vector<8x1xf32>
    %cst_59 = arith.constant 3.200000e+01 : f32
    %124 = vector.broadcast %cst_59 : f32 to vector<8x1xf32>
    %125 = arith.divf %123, %124 : vector<8x1xf32>
    %126 = vector.broadcast %125 : vector<8x1xf32> to vector<8x32xf32>
    %127 = arith.subf %121, %126 : vector<8x32xf32>
    %128 = arith.mulf %127, %127 : vector<8x32xf32>
    %cst_60 = arith.constant dense<0.000000e+00> : vector<8xf32>
    %129 = vector.multi_reduction <add>, %128, %cst_60 [1] : vector<8x32xf32> to vector<8xf32>
    %130 = vector.shape_cast %129 : vector<8xf32> to vector<8x1xf32>
    %cst_61 = arith.constant 3.200000e+01 : f32
    %131 = vector.broadcast %cst_61 : f32 to vector<8x1xf32>
    %132 = arith.divf %130, %131 : vector<8x1xf32>
    %133 = vector.broadcast %125 : vector<8x1xf32> to vector<8x32xf32>
    %134 = arith.subf %121, %133 : vector<8x32xf32>
    %cst_62 = arith.constant 9.99999974E-6 : f32
    %135 = vector.broadcast %cst_62 : f32 to vector<8x1xf32>
    %136 = arith.addf %132, %135 : vector<8x1xf32>
    %137 = math.rsqrt %136 : vector<8x1xf32>
    %138 = vector.broadcast %137 : vector<8x1xf32> to vector<8x32xf32>
    %139 = arith.mulf %134, %138 : vector<8x32xf32>
    %c0_63 = arith.constant 0 : index
    %c0_64 = arith.constant 0 : index
    %140 = vector.load %arg12[%c0_63, %c0_64] : memref<1x32xf32, #tpu.memory_space<vmem>>, vector<1x32xf32>
    %141 = vector.broadcast %140 : vector<1x32xf32> to vector<8x32xf32>
    %142 = arith.mulf %139, %141 : vector<8x32xf32>
    %c0_65 = arith.constant 0 : index
    %c0_66 = arith.constant 0 : index
    %143 = vector.load %arg13[%c0_65, %c0_66] : memref<1x32xf32, #tpu.memory_space<vmem>>, vector<1x32xf32>
    %144 = vector.broadcast %143 : vector<1x32xf32> to vector<8x32xf32>
    %145 = arith.addf %142, %144 : vector<8x32xf32>
    %c0_67 = arith.constant 0 : index
    %c0_68 = arith.constant 0 : index
    %c0_69 = arith.constant 0 : index
    %146 = vector.load %arg14[%c0_67, %c0_68, %c0_69] : memref<1x8x32xf32, #tpu.memory_space<vmem>>, vector<1x8x32xf32>
    %147 = vector.shape_cast %146 : vector<1x8x32xf32> to vector<8x32xf32>
    %148 = vector.shape_cast %145 : vector<8x32xf32> to vector<1x8x32xf32>
    tpu.vector_store %arg14[%c0_67, %c0_68, %c0_69], %148 {strides = array<i32>} : memref<1x8x32xf32, #tpu.memory_space<vmem>>, vector<1x8x32xf32>,
    return
  }
  func.func @transform_0(%arg0: i32) -> (i32, i32, i32) {
    %c0_i32 = arith.constant 0 : i32
    %c0_i32_0 = arith.constant 0 : i32
    %c0_i32_1 = arith.constant 0 : i32
    return %arg0, %c0_i32, %c0_i32_0 : i32, i32, i32
  }
  func.func @transform_1(%arg0: i32) -> (i32, i32, i32) {
    %c0_i32 = arith.constant 0 : i32
    %c0_i32_0 = arith.constant 0 : i32
    %c0_i32_1 = arith.constant 0 : i32
    return %arg0, %c0_i32, %c0_i32_0 : i32, i32, i32
  }
  func.func @transform_2(%arg0: i32) -> (i32, i32) {
    %c0_i32 = arith.constant 0 : i32
    %c0_i32_0 = arith.constant 0 : i32
    %c0_i32_1 = arith.constant 0 : i32
    return %c0_i32, %c0_i32_0 : i32, i32
  }
  func.func @transform_3(%arg0: i32) -> (i32, i32) {
    %c0_i32 = arith.constant 0 : i32
    %c0_i32_0 = arith.constant 0 : i32
    %c0_i32_1 = arith.constant 0 : i32
    return %c0_i32, %c0_i32_0 : i32, i32
  }
  func.func @transform_4(%arg0: i32) -> (i32, i32) {
    %c0_i32 = arith.constant 0 : i32
    %c0_i32_0 = arith.constant 0 : i32
    %c0_i32_1 = arith.constant 0 : i32
    return %c0_i32, %c0_i32_0 : i32, i32
  }
  func.func @transform_5(%arg0: i32) -> (i32, i32) {
    %c0_i32 = arith.constant 0 : i32
    %c0_i32_0 = arith.constant 0 : i32
    %c0_i32_1 = arith.constant 0 : i32
    return %c0_i32, %c0_i32_0 : i32, i32
  }
  func.func @transform_6(%arg0: i32) -> (i32, i32) {
    %c0_i32 = arith.constant 0 : i32
    %c0_i32_0 = arith.constant 0 : i32
    %c0_i32_1 = arith.constant 0 : i32
    return %c0_i32, %c0_i32_0 : i32, i32
  }
  func.func @transform_7(%arg0: i32) -> (i32, i32) {
    %c0_i32 = arith.constant 0 : i32
    %c0_i32_0 = arith.constant 0 : i32
    %c0_i32_1 = arith.constant 0 : i32
    return %c0_i32, %c0_i32_0 : i32, i32
  }
  func.func @transform_8(%arg0: i32) -> (i32, i32) {
    %c0_i32 = arith.constant 0 : i32
    %c0_i32_0 = arith.constant 0 : i32
    %c0_i32_1 = arith.constant 0 : i32
    return %c0_i32, %c0_i32_0 : i32, i32
  }
  func.func @transform_9(%arg0: i32) -> (i32, i32) {
    %c0_i32 = arith.constant 0 : i32
    %c0_i32_0 = arith.constant 0 : i32
    %c0_i32_1 = arith.constant 0 : i32
    return %c0_i32, %c0_i32_0 : i32, i32
  }
  func.func @transform_10(%arg0: i32) -> (i32, i32) {
    %c0_i32 = arith.constant 0 : i32
    %c0_i32_0 = arith.constant 0 : i32
    %c0_i32_1 = arith.constant 0 : i32
    return %c0_i32, %c0_i32_0 : i32, i32
  }
  func.func @transform_11(%arg0: i32) -> (i32, i32) {
    %c0_i32 = arith.constant 0 : i32
    %c0_i32_0 = arith.constant 0 : i32
    %c0_i32_1 = arith.constant 0 : i32
    return %c0_i32, %c0_i32_0 : i32, i32
  }
  func.func @transform_12(%arg0: i32) -> (i32, i32) {
    %c0_i32 = arith.constant 0 : i32
    %c0_i32_0 = arith.constant 0 : i32
    %c0_i32_1 = arith.constant 0 : i32
    return %c0_i32, %c0_i32_0 : i32, i32
  }
  func.func @transform_13(%arg0: i32) -> (i32, i32, i32) {
    %c0_i32 = arith.constant 0 : i32
    %c0_i32_0 = arith.constant 0 : i32
    %c0_i32_1 = arith.constant 0 : i32
    return %arg0, %c0_i32, %c0_i32_0 : i32, i32, i32
  }
}

</mosaic_0001>

<llo_original>
// kernel: tpu_custom_call.1
$region0: #{tpu_custom_call.1}
  #allocation0 [shape = 'u32[]', space=smem, size = 0x4, offset = 0x4, fixed_abs, tag = 'smem constant byte address 0x4 - core index']
  #allocation1 [shape = 'u32[144,128]{1,0:T(1,128)}', space=vmem, size = 0x12000, scoped, tag = 'internal scratch']
  %s0 = inlined_call_operand.hbm [shape: f32[2,8,32], index: 0, kind: input, shape index: {}]
  %s1 = inlined_call_operand.hbm [shape: f32[2,8,32], index: 1, kind: input, shape index: {}]
  %s2 = inlined_call_operand.hbm [shape: f32[8,8], index: 2, kind: input, shape index: {}]
  %s3 = inlined_call_operand.hbm [shape: f32[32,32], index: 3, kind: input, shape index: {}]
  %s4 = inlined_call_operand.vmem [shape: f32[1,32], index: 4, kind: input, shape index: {}]
  %s5 = inlined_call_operand.hbm [shape: f32[32,32], index: 5, kind: input, shape index: {}]
  %s6 = inlined_call_operand.vmem [shape: f32[1,32], index: 6, kind: input, shape index: {}]
  %s7 = inlined_call_operand.hbm [shape: f32[32,32], index: 7, kind: input, shape index: {}]
  %s8 = inlined_call_operand.hbm [shape: f32[1,32], index: 8, kind: input, shape index: {}]
  %s9 = inlined_call_operand.vmem [shape: f32[32,32], index: 9, kind: input, shape index: {}]
  %s10 = inlined_call_operand.vmem [shape: f32[1,32], index: 10, kind: input, shape index: {}]
  %s11 = inlined_call_operand.vmem [shape: f32[1,32], index: 11, kind: input, shape index: {}]
  %s12 = inlined_call_operand.vmem [shape: f32[1,32], index: 12, kind: input, shape index: {}]
  %s13 = inlined_call_operand.hbm [shape: f32[2,8,32], index: 13, kind: output, shape index: {}]
  %s14 = sld [smem:[#allocation0]]
  $region113: #{tpu_custom_call.1} parent=0
    _
  %s16 = ssub.s32 1, %s14
  %s17 = scalar_select 0, %s16, %s14
  $region1: #{tpu_custom_call.1} parent=0
    #allocation2 [shape = 'u8[8192]{0}', space=vmem, size = 0x2000, scoped, tag = 'input window, operand 0']
    #allocation3 [shape = 's32[2]{0}', space=sflag, size = 0x8, scoped, tag = 'scoped memory for tpu_custom_call.1']
    #allocation4 [shape = 's32[2]{0}', space=sflag, size = 0x8, scoped, tag = 'scoped memory for tpu_custom_call.1']
    #allocation5 [shape = 'u8[8192]{0}', space=vmem, size = 0x2000, scoped, tag = 'input window, operand 1']
    #allocation6 [shape = 's32[2]{0}', space=sflag, size = 0x8, scoped, tag = 'scoped memory for tpu_custom_call.1']
    #allocation7 [shape = 'u8[4096]{0}', space=vmem, size = 0x1000, scoped, tag = 'input window, operand 2, single buffered']
    #allocation8 [shape = 'u8[16384]{0}', space=vmem, size = 0x4000, scoped, tag = 'input window, operand 3, single buffered']
    #allocation9 [shape = 's32[1]{0}', space=sflag, size = 0x4, scoped, tag = 'scoped memory for tpu_custom_call.1']
    #allocation10 [shape = 'u8[16384]{0}', space=vmem, size = 0x4000, scoped, tag = 'input window, operand 5, single buffered']
    #allocation11 [shape = 'u8[16384]{0}', space=vmem, size = 0x4000, scoped, tag = 'input window, operand 7, single buffered']
    #allocation12 [shape = 's32[1]{0}', space=sflag, size = 0x4, scoped, tag = 'scoped memory for tpu_custom_call.1']
    #allocation13 [shape = 'u8[512]{0}', space=vmem, size = 0x400, scoped, tag = 'input window, operand 8, single buffered']
    #allocation14 [shape = 'u8[8192]{0}', space=vmem, size = 0x2000, scoped, tag = 'output window, operand 0']
    %18 = vsyncpa [#allocation3], 0
    %s19 = scalar_lea.sflag [#allocation3], 1
    %20 = vsyncpa %s19, 0
    %21 = vsyncpa [#allocation6], 0
    %s22 = scalar_lea.sflag [#allocation6], 1
    %23 = vsyncpa %s22, 0
    %24 = vsyncpa [#allocation9], 0
    %25 = vsyncpa [#allocation12], 0
    %26 = vsyncpa [#allocation4], 0
    %s27 = scalar_lea.sflag [#allocation4], 1
    %28 = vsyncpa %s27, 0
    loop: start=0, step=1, limit=4
    $region2: #{tpu_custom_call.1} parent=1 // loop_pre_header
      _
    $region3: #{tpu_custom_call.1} parent=1 // loop_header
      %s30 = sphi 0, %s34
      %p31 = scmp.ge.s32.totalorder %s30, 4
      %s40 = sphi 0, %s42
      %s43 = sphi 0, %s40
      %s44 = sphi 0, %s43
      %s60 = sphi 0, %s44
      %s66 = sphi 0, %s68
      %s69 = sphi 0, %s66
      %s70 = sphi 0, %s69
      %s86 = sphi 0, %s70
      %s90 = sphi 0, %s90
      %s92 = sphi 0, %s90
      %s93 = sphi 0, %s92
      %s107 = sphi 0, %s93
      %s111 = sphi 0, %s111
      %s113 = sphi 0, %s111
      %s114 = sphi 0, %s113
      %s128 = sphi 0, %s114
      %s132 = sphi 0, %s132
      %s134 = sphi 0, %s132
      %s135 = sphi 0, %s134
      %s149 = sphi 0, %s135
      %s153 = sphi 0, %s153
      %s155 = sphi 0, %s153
      %s156 = sphi 0, %s155
      %s170 = sphi 0, %s156
      %s174 = sphi 0, %s174
      %s176 = sphi 0, %s174
      %s177 = sphi 0, %s176
      %s191 = sphi 0, %s177
      %s195 = sphi 0, %s195
      %s197 = sphi 0, %s195
      %s198 = sphi 0, %s197
      %s212 = sphi 0, %s198
      %s216 = sphi 0, %s216
      %s218 = sphi 0, %s216
      %s219 = sphi 0, %s218
      %s233 = sphi 0, %s219
      %s237 = sphi 0, %s237
      %s239 = sphi 0, %s237
      %s240 = sphi 0, %s239
      %s254 = sphi 0, %s240
      %s258 = sphi 0, %s258
      %s260 = sphi 0, %s258
      %s261 = sphi 0, %s260
      %s275 = sphi 0, %s261
      %s279 = sphi 0, %s279
      %s281 = sphi 0, %s279
      %s282 = sphi 0, %s281
      %s296 = sphi 0, %s282
      %s300 = sphi 0, %s300
      %s302 = sphi 0, %s300
      %s303 = sphi 0, %s302
      %s317 = sphi 0, %s303
      %s323 = sphi 0, %s325
      %s326 = sphi 0, %s323
      %s327 = sphi 0, %s326
      %s343 = sphi 0, %s327
    $region4: #{tpu_custom_call.1} parent=1 // loop_header_branch
      %33 = sbr.rel (%p31) target = $region8
    $region5: #{tpu_custom_call.1} parent=1 // loop_body
      %s35 = ssub.s32 %s30, 1
      %s36 = ssub.s32 %s30, 2
      %s37 = sadd.s32 %s30, 1
      %s38 = ssub.s32 %s30, %s37
      %p39 = scmp.eq.s32.totalorder %s38, 0
      %s41 = sadd.s32 %s40, 1
      %s42 = scalar_select %p39, %s40, %s41
      %p45 = pneg %p39
      %p46 = scmp.eq.s32.totalorder %s30, 1
      %p47 = por %p45, %p46
      %p48 = scmp.ne.s32.totalorder %s40, %s43
      %p49 = scmp.eq.s32.totalorder %s30, 0
      %p50 = por %p48, %p49
      %p51 = scmp.ne.s32.totalorder %s40, %s43
      %p52 = scmp.eq.s32.totalorder %s35, 1
      %p53 = por %p51, %p52
      %p54 = scmp.ne.s32.totalorder %s43, %s44
      %p55 = scmp.eq.s32.totalorder %s35, 0
      %p56 = por %p54, %p55
      %p57 = scmp.ne.s32.totalorder %s43, %s44
      %p58 = scmp.eq.s32.totalorder %s36, 1
      %p59 = por %p57, %p58
      %p61 = scmp.ne.s32.totalorder %s44, %s60
      %p62 = scmp.eq.s32.totalorder %s36, 0
      %p63 = por %p61, %p62
      %s64 = ssub.s32 %s30, %s37
      %p65 = scmp.eq.s32.totalorder %s64, 0
      %s67 = sadd.s32 %s66, 1
      %s68 = scalar_select %p65, %s66, %s67
      %p71 = pneg %p65
      %p72 = scmp.eq.s32.totalorder %s30, 1
      %p73 = por %p71, %p72
      %p74 = scmp.ne.s32.totalorder %s66, %s69
      %p75 = scmp.eq.s32.totalorder %s30, 0
      %p76 = por %p74, %p75
      %p77 = scmp.ne.s32.totalorder %s66, %s69
      %p78 = scmp.eq.s32.totalorder %s35, 1
      %p79 = por %p77, %p78
      %p80 = scmp.ne.s32.totalorder %s69, %s70
      %p81 = scmp.eq.s32.totalorder %s35, 0
      %p82 = por %p80, %p81
      %p83 = scmp.ne.s32.totalorder %s69, %s70
      %p84 = scmp.eq.s32.totalorder %s36, 1
      %p85 = por %p83, %p84
      %p87 = scmp.ne.s32.totalorder %s70, %s86
      %p88 = scmp.eq.s32.totalorder %s36, 0
      %p89 = por %p87, %p88
      %s91 = sadd.s32 %s90, 1
      %p94 = scmp.eq.s32.totalorder %s30, 1
      %p95 = scmp.ne.s32.totalorder %s90, %s92
      %p96 = scmp.eq.s32.totalorder %s30, 0
      %p97 = por %p95, %p96
      %p98 = scmp.ne.s32.totalorder %s90, %s92
      %p99 = scmp.eq.s32.totalorder %s35, 1
      %p100 = por %p98, %p99
      %p101 = scmp.ne.s32.totalorder %s92, %s93
      %p102 = scmp.eq.s32.totalorder %s35, 0
      %p103 = por %p101, %p102
      %p104 = scmp.ne.s32.totalorder %s92, %s93
      %p105 = scmp.eq.s32.totalorder %s36, 1
      %p106 = por %p104, %p105
      %p108 = scmp.ne.s32.totalorder %s93, %s107
      %p109 = scmp.eq.s32.totalorder %s36, 0
      %p110 = por %p108, %p109
      %s112 = sadd.s32 %s111, 1
      %p115 = scmp.eq.s32.totalorder %s30, 1
      %p116 = scmp.ne.s32.totalorder %s111, %s113
      %p117 = scmp.eq.s32.totalorder %s30, 0
      %p118 = por %p116, %p117
      %p119 = scmp.ne.s32.totalorder %s111, %s113
      %p120 = scmp.eq.s32.totalorder %s35, 1
      %p121 = por %p119, %p120
      %p122 = scmp.ne.s32.totalorder %s113, %s114
      %p123 = scmp.eq.s32.totalorder %s35, 0
      %p124 = por %p122, %p123
      %p125 = scmp.ne.s32.totalorder %s113, %s114
      %p126 = scmp.eq.s32.totalorder %s36, 1
      %p127 = por %p125, %p126
      %p129 = scmp.ne.s32.totalorder %s114, %s128
      %p130 = scmp.eq.s32.totalorder %s36, 0
      %p131 = por %p129, %p130
      %s133 = sadd.s32 %s132, 1
      %p136 = scmp.eq.s32.totalorder %s30, 1
      %p137 = scmp.ne.s32.totalorder %s132, %s134
      %p138 = scmp.eq.s32.totalorder %s30, 0
      %p139 = por %p137, %p138
      %p140 = scmp.ne.s32.totalorder %s132, %s134
      %p141 = scmp.eq.s32.totalorder %s35, 1
      %p142 = por %p140, %p141
      %p143 = scmp.ne.s32.totalorder %s134, %s135
      %p144 = scmp.eq.s32.totalorder %s35, 0
      %p145 = por %p143, %p144
      %p146 = scmp.ne.s32.totalorder %s134, %s135
      %p147 = scmp.eq.s32.totalorder %s36, 1
      %p148 = por %p146, %p147
      %p150 = scmp.ne.s32.totalorder %s135, %s149
      %p151 = scmp.eq.s32.totalorder %s36, 0
      %p152 = por %p150, %p151
      %s154 = sadd.s32 %s153, 1
      %p157 = scmp.eq.s32.totalorder %s30, 1
      %p158 = scmp.ne.s32.totalorder %s153, %s155
      %p159 = scmp.eq.s32.totalorder %s30, 0
      %p160 = por %p158, %p159
      %p161 = scmp.ne.s32.totalorder %s153, %s155
      %p162 = scmp.eq.s32.totalorder %s35, 1
      %p163 = por %p161, %p162
      %p164 = scmp.ne.s32.totalorder %s155, %s156
      %p165 = scmp.eq.s32.totalorder %s35, 0
      %p166 = por %p164, %p165
      %p167 = scmp.ne.s32.totalorder %s155, %s156
      %p168 = scmp.eq.s32.totalorder %s36, 1
      %p169 = por %p167, %p168
      %p171 = scmp.ne.s32.totalorder %s156, %s170
      %p172 = scmp.eq.s32.totalorder %s36, 0
      %p173 = por %p171, %p172
      %s175 = sadd.s32 %s174, 1
      %p178 = scmp.eq.s32.totalorder %s30, 1
      %p179 = scmp.ne.s32.totalorder %s174, %s176
      %p180 = scmp.eq.s32.totalorder %s30, 0
      %p181 = por %p179, %p180
      %p182 = scmp.ne.s32.totalorder %s174, %s176
      %p183 = scmp.eq.s32.totalorder %s35, 1
      %p184 = por %p182, %p183
      %p185 = scmp.ne.s32.totalorder %s176, %s177
      %p186 = scmp.eq.s32.totalorder %s35, 0
      %p187 = por %p185, %p186
      %p188 = scmp.ne.s32.totalorder %s176, %s177
      %p189 = scmp.eq.s32.totalorder %s36, 1
      %p190 = por %p188, %p189
      %p192 = scmp.ne.s32.totalorder %s177, %s191
      %p193 = scmp.eq.s32.totalorder %s36, 0
      %p194 = por %p192, %p193
      %s196 = sadd.s32 %s195, 1
      %p199 = scmp.eq.s32.totalorder %s30, 1
      %p200 = scmp.ne.s32.totalorder %s195, %s197
      %p201 = scmp.eq.s32.totalorder %s30, 0
      %p202 = por %p200, %p201
      %p203 = scmp.ne.s32.totalorder %s195, %s197
      %p204 = scmp.eq.s32.totalorder %s35, 1
      %p205 = por %p203, %p204
      %p206 = scmp.ne.s32.totalorder %s197, %s198
      %p207 = scmp.eq.s32.totalorder %s35, 0
      %p208 = por %p206, %p207
      %p209 = scmp.ne.s32.totalorder %s197, %s198
      %p210 = scmp.eq.s32.totalorder %s36, 1
      %p211 = por %p209, %p210
      %p213 = scmp.ne.s32.totalorder %s198, %s212
      %p214 = scmp.eq.s32.totalorder %s36, 0
      %p215 = por %p213, %p214
      %s217 = sadd.s32 %s216, 1
      %p220 = scmp.eq.s32.totalorder %s30, 1
      %p221 = scmp.ne.s32.totalorder %s216, %s218
      %p222 = scmp.eq.s32.totalorder %s30, 0
      %p223 = por %p221, %p222
      %p224 = scmp.ne.s32.totalorder %s216, %s218
      %p225 = scmp.eq.s32.totalorder %s35, 1
      %p226 = por %p224, %p225
      %p227 = scmp.ne.s32.totalorder %s218, %s219
      %p228 = scmp.eq.s32.totalorder %s35, 0
      %p229 = por %p227, %p228
      %p230 = scmp.ne.s32.totalorder %s218, %s219
      %p231 = scmp.eq.s32.totalorder %s36, 1
      %p232 = por %p230, %p231
      %p234 = scmp.ne.s32.totalorder %s219, %s233
      %p235 = scmp.eq.s32.totalorder %s36, 0
      %p236 = por %p234, %p235
      %s238 = sadd.s32 %s237, 1
      %p241 = scmp.eq.s32.totalorder %s30, 1
      %p242 = scmp.ne.s32.totalorder %s237, %s239
      %p243 = scmp.eq.s32.totalorder %s30, 0
      %p244 = por %p242, %p243
      %p245 = scmp.ne.s32.totalorder %s237, %s239
      %p246 = scmp.eq.s32.totalorder %s35, 1
      %p247 = por %p245, %p246
      %p248 = scmp.ne.s32.totalorder %s239, %s240
      %p249 = scmp.eq.s32.totalorder %s35, 0
      %p250 = por %p248, %p249
      %p251 = scmp.ne.s32.totalorder %s239, %s240
      %p252 = scmp.eq.s32.totalorder %s36, 1
      %p253 = por %p251, %p252
      %p255 = scmp.ne.s32.totalorder %s240, %s254
      %p256 = scmp.eq.s32.totalorder %s36, 0
      %p257 = por %p255, %p256
      %s259 = sadd.s32 %s258, 1
      %p262 = scmp.eq.s32.totalorder %s30, 1
      %p263 = scmp.ne.s32.totalorder %s258, %s260
      %p264 = scmp.eq.s32.totalorder %s30, 0
      %p265 = por %p263, %p264
      %p266 = scmp.ne.s32.totalorder %s258, %s260
      %p267 = scmp.eq.s32.totalorder %s35, 1
      %p268 = por %p266, %p267
      %p269 = scmp.ne.s32.totalorder %s260, %s261
      %p270 = scmp.eq.s32.totalorder %s35, 0
      %p271 = por %p269, %p270
      %p272 = scmp.ne.s32.totalorder %s260, %s261
      %p273 = scmp.eq.s32.totalorder %s36, 1
      %p274 = por %p272, %p273
      %p276 = scmp.ne.s32.totalorder %s261, %s275
      %p277 = scmp.eq.s32.totalorder %s36, 0
      %p278 = por %p276, %p277
      %s280 = sadd.s32 %s279, 1
      %p283 = scmp.eq.s32.totalorder %s30, 1
      %p284 = scmp.ne.s32.totalorder %s279, %s281
      %p285 = scmp.eq.s32.totalorder %s30, 0
      %p286 = por %p284, %p285
      %p287 = scmp.ne.s32.totalorder %s279, %s281
      %p288 = scmp.eq.s32.totalorder %s35, 1
      %p289 = por %p287, %p288
      %p290 = scmp.ne.s32.totalorder %s281, %s282
      %p291 = scmp.eq.s32.totalorder %s35, 0
      %p292 = por %p290, %p291
      %p293 = scmp.ne.s32.totalorder %s281, %s282
      %p294 = scmp.eq.s32.totalorder %s36, 1
      %p295 = por %p293, %p294
      %p297 = scmp.ne.s32.totalorder %s282, %s296
      %p298 = scmp.eq.s32.totalorder %s36, 0
      %p299 = por %p297, %p298
      %s301 = sadd.s32 %s300, 1
      %p304 = scmp.eq.s32.totalorder %s30, 1
      %p305 = scmp.ne.s32.totalorder %s300, %s302
      %p306 = scmp.eq.s32.totalorder %s30, 0
      %p307 = por %p305, %p306
      %p308 = scmp.ne.s32.totalorder %s300, %s302
      %p309 = scmp.eq.s32.totalorder %s35, 1
      %p310 = por %p308, %p309
      %p311 = scmp.ne.s32.totalorder %s302, %s303
      %p312 = scmp.eq.s32.totalorder %s35, 0
      %p313 = por %p311, %p312
      %p314 = scmp.ne.s32.totalorder %s302, %s303
      %p315 = scmp.eq.s32.totalorder %s36, 1
      %p316 = por %p314, %p315
      %p318 = scmp.ne.s32.totalorder %s303, %s317
      %p319 = scmp.eq.s32.totalorder %s36, 0
      %p320 = por %p318, %p319
      %s321 = ssub.s32 %s30, %s37
      %p322 = scmp.eq.s32.totalorder %s321, 0
      %s324 = sadd.s32 %s323, 1
      %s325 = scalar_select %p322, %s323, %s324
      %p328 = pneg %p322
      %p329 = scmp.eq.s32.totalorder %s30, 1
      %p330 = por %p328, %p329
      %p331 = scmp.ne.s32.totalorder %s323, %s326
      %p332 = scmp.eq.s32.totalorder %s30, 0
      %p333 = por %p331, %p332
      %p334 = scmp.ne.s32.totalorder %s323, %s326
      %p335 = scmp.eq.s32.totalorder %s35, 1
      %p336 = por %p334, %p335
      %p337 = scmp.ne.s32.totalorder %s326, %s327
      %p338 = scmp.eq.s32.totalorder %s35, 0
      %p339 = por %p337, %p338
      %p340 = scmp.ne.s32.totalorder %s326, %s327
      %p341 = scmp.eq.s32.totalorder %s36, 1
      %p342 = por %p340, %p341
      %p344 = scmp.ne.s32.totalorder %s327, %s343
      %p345 = scmp.eq.s32.totalorder %s36, 0
      %p346 = por %p344, %p345
      %p347 = scmp.le.s32.totalorder 1, %s30
      %p348 = scmp.lt.s32.totalorder %s30, 3
      %p349 = pnand %p347, %p348
      %p350 = pneg %p349
      // Predicated region
      $region9: #{tpu_custom_call.1} parent=5 // pred_check
        _
      $region10: #{tpu_custom_call.1} parent=5 // pred_check_branch
        %352 = sbr.rel (%p349) target = $region12
      $region11: #{tpu_custom_call.1} parent=5 // pred_region
        %s353 = ssub.s32 %s30, 1
        // Predicated region
        $region13: #{tpu_custom_call.1} parent=11 // pred_check
          %p354 = pneg %p103
        $region14: #{tpu_custom_call.1} parent=11 // pred_check_branch
          %356 = sbr.rel (%p354) target = $region16
        $region15: #{tpu_custom_call.1} parent=11 // pred_region
          %s358 = ssub.s32 128, 128
          %359 = vsyncadd [#allocation6], %s358
          %s361 = sshll.u32 [#allocation7], 4
          %s362 = int_to_ptr.vmem [resolvable:$true] %s361
          %364 = dma.hbm_to_vmem [thread:$0]  %s2, 128, %s362, [#allocation6]
        $region16: #{tpu_custom_call.1} parent=11 // pred_fallthru
          _
        // Predicated region
        $region17: #{tpu_custom_call.1} parent=11 // pred_check
          %p365 = pneg %p124
        $region18: #{tpu_custom_call.1} parent=11 // pred_check_branch
          %367 = sbr.rel (%p365) target = $region20
        $region19: #{tpu_custom_call.1} parent=11 // pred_region
          %s369 = ssub.s32 512, 512
          %370 = vsyncadd [#allocation9], %s369
          %s371 = sshll.u32 [#allocation8], 4
          %s372 = int_to_ptr.vmem [resolvable:$true] %s371
          %377 = dma.hbm_to_vmem [thread:$0]  %s3, 512, %s372, [#allocation9], 128, 128, 8
        $region20: #{tpu_custom_call.1} parent=11 // pred_fallthru
          _
        // Predicated region
        $region21: #{tpu_custom_call.1} parent=11 // pred_check
          %p378 = pneg %p145
        $region22: #{tpu_custom_call.1} parent=11 // pred_check_branch
          %380 = sbr.rel (%p378) target = $region24
        $region23: #{tpu_custom_call.1} parent=11 // pred_region
          _
        $region24: #{tpu_custom_call.1} parent=11 // pred_fallthru
          _
        // Predicated region
        $region25: #{tpu_custom_call.1} parent=11 // pred_check
          %p381 = pneg %p166
        $region26: #{tpu_custom_call.1} parent=11 // pred_check_branch
          %383 = sbr.rel (%p381) target = $region28
        $region27: #{tpu_custom_call.1} parent=11 // pred_region
          %s385 = ssub.s32 512, 512
          %386 = vsyncadd [#allocation9], %s385
          %s387 = sshll.u32 [#allocation10], 4
          %s388 = int_to_ptr.vmem [resolvable:$true] %s387
          %393 = dma.hbm_to_vmem [thread:$0]  %s5, 512, %s388, [#allocation9], 128, 128, 8
        $region28: #{tpu_custom_call.1} parent=11 // pred_fallthru
          _
        // Predicated region
        $region29: #{tpu_custom_call.1} parent=11 // pred_check
          %p394 = pneg %p187
        $region30: #{tpu_custom_call.1} parent=11 // pred_check_branch
          %396 = sbr.rel (%p394) target = $region32
        $region31: #{tpu_custom_call.1} parent=11 // pred_region
          _
        $region32: #{tpu_custom_call.1} parent=11 // pred_fallthru
          _
        // Predicated region
        $region33: #{tpu_custom_call.1} parent=11 // pred_check
          %p397 = pneg %p208
        $region34: #{tpu_custom_call.1} parent=11 // pred_check_branch
          %399 = sbr.rel (%p397) target = $region36
        $region35: #{tpu_custom_call.1} parent=11 // pred_region
          %s401 = ssub.s32 512, 512
          %402 = vsyncadd [#allocation12], %s401
          %s403 = sshll.u32 [#allocation11], 4
          %s404 = int_to_ptr.vmem [resolvable:$true] %s403
          %409 = dma.hbm_to_vmem [thread:$0]  %s7, 512, %s404, [#allocation12], 128, 128, 8
        $region36: #{tpu_custom_call.1} parent=11 // pred_fallthru
          _
        // Predicated region
        $region37: #{tpu_custom_call.1} parent=11 // pred_check
          %p410 = pneg %p229
        $region38: #{tpu_custom_call.1} parent=11 // pred_check_branch
          %412 = sbr.rel (%p410) target = $region40
        $region39: #{tpu_custom_call.1} parent=11 // pred_region
          %s414 = ssub.s32 16, 16
          %415 = vsyncadd [#allocation12], %s414
          %s417 = sshll.u32 [#allocation13], 4
          %s418 = int_to_ptr.vmem [resolvable:$true] %s417
          %420 = dma.hbm_to_vmem [thread:$0]  %s8, 16, %s418, [#allocation12]
        $region40: #{tpu_custom_call.1} parent=11 // pred_fallthru
          _
        // Predicated region
        $region41: #{tpu_custom_call.1} parent=11 // pred_check
          %p421 = pneg %p250
        $region42: #{tpu_custom_call.1} parent=11 // pred_check_branch
          %423 = sbr.rel (%p421) target = $region44
        $region43: #{tpu_custom_call.1} parent=11 // pred_region
          _
        $region44: #{tpu_custom_call.1} parent=11 // pred_fallthru
          _
        // Predicated region
        $region45: #{tpu_custom_call.1} parent=11 // pred_check
          %p424 = pneg %p271
        $region46: #{tpu_custom_call.1} parent=11 // pred_check_branch
          %426 = sbr.rel (%p424) target = $region48
        $region47: #{tpu_custom_call.1} parent=11 // pred_region
          _
        $region48: #{tpu_custom_call.1} parent=11 // pred_fallthru
          _
        // Predicated region
        $region49: #{tpu_custom_call.1} parent=11 // pred_check
          %p427 = pneg %p292
        $region50: #{tpu_custom_call.1} parent=11 // pred_check_branch
          %429 = sbr.rel (%p427) target = $region52
        $region51: #{tpu_custom_call.1} parent=11 // pred_region
          _
        $region52: #{tpu_custom_call.1} parent=11 // pred_fallthru
          _
        // Predicated region
        $region53: #{tpu_custom_call.1} parent=11 // pred_check
          %p430 = pneg %p313
        $region54: #{tpu_custom_call.1} parent=11 // pred_check_branch
          %432 = sbr.rel (%p430) target = $region56
        $region55: #{tpu_custom_call.1} parent=11 // pred_region
          _
        $region56: #{tpu_custom_call.1} parent=11 // pred_fallthru
          _
      $region12: #{tpu_custom_call.1} parent=5 // pred_fallthru
        _
      %p433 = scmp.lt.s32.totalorder %s30, 2
      // Predicated region
      $region57: #{tpu_custom_call.1} parent=5 // pred_check
        %p434 = pneg %p433
      $region58: #{tpu_custom_call.1} parent=5 // pred_check_branch
        %436 = sbr.rel (%p434) target = $region60
      $region59: #{tpu_custom_call.1} parent=5 // pred_region
        // Predicated region
        $region61: #{tpu_custom_call.1} parent=59 // pred_check
          %p437 = pneg %p50
        $region62: #{tpu_custom_call.1} parent=59 // pred_check_branch
          %439 = sbr.rel (%p437) target = $region64
        $region63: #{tpu_custom_call.1} parent=59 // pred_region
          %s440 = sand.u32 %s40, 1
          %s441 = scalar_lea.sflag [#allocation3], %s440
          %s442 = sand.u32 %s40, 1
          %s443 = smul.addr %s442, 8
          %s444 = scalar_lea.vmem [#allocation2], %s443
          %s446 = ssub.s32 128, 128
          %447 = vsyncadd %s441, %s446
          %s448 = smul.addr %s30, 128
          %s449 = scalar_lea.hbm %s0, %s448
          %s451 = sshll.u32 %s444, 4
          %s452 = int_to_ptr.vmem [resolvable:$true] %s451
          %454 = dma.hbm_to_vmem [thread:$0]  %s449, 128, %s452, %s441
        $region64: #{tpu_custom_call.1} parent=59 // pred_fallthru
          _
        // Predicated region
        $region65: #{tpu_custom_call.1} parent=59 // pred_check
          %p455 = pneg %p76
        $region66: #{tpu_custom_call.1} parent=59 // pred_check_branch
          %457 = sbr.rel (%p455) target = $region68
        $region67: #{tpu_custom_call.1} parent=59 // pred_region
          %s458 = sand.u32 %s30, 1
          %s459 = scalar_lea.sflag [#allocation6], %s458
          %s460 = sand.u32 %s66, 1
          %s461 = smul.addr %s460, 8
          %s462 = scalar_lea.vmem [#allocation5], %s461
          %s464 = ssub.s32 128, 128
          %465 = vsyncadd %s459, %s464
          %s466 = smul.addr %s30, 128
          %s467 = scalar_lea.hbm %s1, %s466
          %s469 = sshll.u32 %s462, 4
          %s470 = int_to_ptr.vmem [resolvable:$true] %s469
          %472 = dma.hbm_to_vmem [thread:$0]  %s467, 128, %s470, %s459
        $region68: #{tpu_custom_call.1} parent=59 // pred_fallthru
          _
      $region60: #{tpu_custom_call.1} parent=5 // pred_fallthru
        _
      %p473 = scmp.le.s32.totalorder 1, %s30
      %p474 = scmp.lt.s32.totalorder %s30, 3
      %p475 = pnand %p473, %p474
      %p476 = pneg %p475
      // Predicated region
      $region69: #{tpu_custom_call.1} parent=5 // pred_check
        _
      $region70: #{tpu_custom_call.1} parent=5 // pred_check_branch
        %478 = sbr.rel (%p475) target = $region72
      $region71: #{tpu_custom_call.1} parent=5 // pred_region
        %s479 = ssub.s32 %s30, 1
        %s480 = sand.u32 %s43, 1
        %s481 = scalar_lea.sflag [#allocation3], %s480
        %s482 = sand.u32 %s43, 1
        %s483 = smul.addr %s482, 8
        %s484 = scalar_lea.vmem [#allocation2], %s483
        // Predicated region
        $region73: #{tpu_custom_call.1} parent=71 // pred_check
          %p485 = pneg %p56
        $region74: #{tpu_custom_call.1} parent=71 // pred_check_branch
          %487 = sbr.rel (%p485) target = $region76
        $region75: #{tpu_custom_call.1} parent=71 // pred_region
          %488 = dma.done %s481, 128
        $region76: #{tpu_custom_call.1} parent=71 // pred_fallthru
          _
        %s489 = sand.u32 %s35, 1
        %s490 = scalar_lea.sflag [#allocation6], %s489
        %s491 = sand.u32 %s69, 1
        %s492 = smul.addr %s491, 8
        %s493 = scalar_lea.vmem [#allocation5], %s492
        // Predicated region
        $region77: #{tpu_custom_call.1} parent=71 // pred_check
          %p494 = pneg %p82
        $region78: #{tpu_custom_call.1} parent=71 // pred_check_branch
          %496 = sbr.rel (%p494) target = $region80
        $region79: #{tpu_custom_call.1} parent=71 // pred_region
          %497 = dma.done %s490, 128
        $region80: #{tpu_custom_call.1} parent=71 // pred_fallthru
          _
        // Predicated region
        $region81: #{tpu_custom_call.1} parent=71 // pred_check
          %p498 = pneg %p103
        $region82: #{tpu_custom_call.1} parent=71 // pred_check_branch
          %500 = sbr.rel (%p498) target = $region84
        $region83: #{tpu_custom_call.1} parent=71 // pred_region
          %501 = dma.done [#allocation6], 128
        $region84: #{tpu_custom_call.1} parent=71 // pred_fallthru
          _
        // Predicated region
        $region85: #{tpu_custom_call.1} parent=71 // pred_check
          %p502 = pneg %p124
        $region86: #{tpu_custom_call.1} parent=71 // pred_check_branch
          %504 = sbr.rel (%p502) target = $region88
        $region87: #{tpu_custom_call.1} parent=71 // pred_region
          %505 = dma.done [#allocation9], 512
        $region88: #{tpu_custom_call.1} parent=71 // pred_fallthru
          _
        // Predicated region
        $region89: #{tpu_custom_call.1} parent=71 // pred_check
          %p506 = pneg %p166
        $region90: #{tpu_custom_call.1} parent=71 // pred_check_branch
          %508 = sbr.rel (%p506) target = $region92
        $region91: #{tpu_custom_call.1} parent=71 // pred_region
          %509 = dma.done [#allocation9], 512
        $region92: #{tpu_custom_call.1} parent=71 // pred_fallthru
          _
        // Predicated region
        $region93: #{tpu_custom_call.1} parent=71 // pred_check
          %p510 = pneg %p208
        $region94: #{tpu_custom_call.1} parent=71 // pred_check_branch
          %512 = sbr.rel (%p510) target = $region96
        $region95: #{tpu_custom_call.1} parent=71 // pred_region
          %513 = dma.done [#allocation12], 512
        $region96: #{tpu_custom_call.1} parent=71 // pred_fallthru
          _
        // Predicated region
        $region97: #{tpu_custom_call.1} parent=71 // pred_check
          %p514 = pneg %p229
        $region98: #{tpu_custom_call.1} parent=71 // pred_check_branch
          %516 = sbr.rel (%p514) target = $region100
        $region99: #{tpu_custom_call.1} parent=71 // pred_region
          %517 = dma.done [#allocation12], 16
        $region100: #{tpu_custom_call.1} parent=71 // pred_fallthru
          _
        %s518 = sand.u32 %s43, 1
        %s519 = scalar_lea.sflag [#allocation3], %s518
        %s520 = sand.u32 %s43, 1
        %s521 = smul.addr %s520, 8
        %s522 = scalar_lea.vmem [#allocation2], %s521
        %p523 = pneg %p56
        %p524 = pneg %p53
        %s525 = sand.u32 %s35, 1
        %s526 = scalar_lea.sflag [#allocation6], %s525
        %s527 = sand.u32 %s69, 1
        %s528 = smul.addr %s527, 8
        %s529 = scalar_lea.vmem [#allocation5], %s528
        %p530 = pneg %p82
        %p531 = pneg %p79
        %p532 = pneg %p103
        %p533 = pneg %p100
        %p534 = pneg %p124
        %p535 = pneg %p121
        %p536 = pneg %p145
        %p537 = pneg %p142
        %p538 = pneg %p166
        %p539 = pneg %p163
        %p540 = pneg %p187
        %p541 = pneg %p184
        %p542 = pneg %p208
        %p543 = pneg %p205
        %p544 = pneg %p229
        %p545 = pneg %p226
        %p546 = pneg %p250
        %p547 = pneg %p247
        %p548 = pneg %p271
        %p549 = pneg %p268
        %p550 = pneg %p292
        %p551 = pneg %p289
        %p552 = pneg %p313
        %p553 = pneg %p310
        %p554 = pneg %p339
        %p555 = pneg %p336
        %s556 = sand.u32 %s326, 1
        %s557 = scalar_lea.sflag [#allocation4], %s556
        %s558 = sand.u32 %s326, 1
        %s559 = smul.addr %s558, 8
        %s560 = scalar_lea.vmem [#allocation14], %s559
        %v561 = vld [vmem:[%s484] sm:$0xff]
        %v562 = vld [vmem:[%s493] sm:$0xff]
        %v563 = vld [vmem:[#allocation7] sm:$0xff]
        %v564 = vld [vmem:[#allocation8] sm:$0xff]
        %v565 = vld [vmem:[#allocation8 + $0x8] sm:$0xff]
        %v566 = vld [vmem:[#allocation8 + $0x10] sm:$0xff]
        %v567 = vld [vmem:[#allocation8 + $0x18] sm:$0xff]
        %v568 = vld [vmem:[%s4] sm:$0x1]
        %v570 = vlaneseq
        %v571 = vshrl.u32 %v570, 7
        %v572 = vsub.s32 0, %v571
        %v573 = vrot.slane %v568, %v572
        %vm575 = vcmask 261120
        %v577 = vsel %vm575, %v561, 0
        %579 = vmatprep.subr.mxu0 0.0
        %580 = vmatpush1.msra.mxu0 %v564
        %581 = vmatprep.subr.mxu0 0.0
        %582 = vmatpush1.msra.mxu0 %v565
        %583 = vmatprep.subr.mxu0 0.0
        %584 = vmatpush1.msra.mxu0 %v566
        %585 = vmatprep.subr.mxu0 0.0
        %586 = vmatpush1.msra.mxu0 %v567
        %587 = vmatprep.subr.mxu0 0.0
        %588 = vmatpush1.msra.mxu0 0.0
        %589 = vmatprep.subr.mxu0 0.0
        %590 = vmatpush1.msra.mxu0 0.0
        %591 = vmatprep.subr.mxu0 0.0
        %592 = vmatpush1.msra.mxu0 0.0
        %593 = vmatprep.subr.mxu0 0.0
        %594 = vmatpush1.msra.mxu0 0.0
        %595 = vmatprep.subr.mxu0 0.0
        %596 = vmatpush1.msra.mxu0 0.0
        %597 = vmatprep.subr.mxu0 0.0
        %598 = vmatpush1.msra.mxu0 0.0
        %599 = vmatprep.subr.mxu0 0.0
        %600 = vmatpush1.msra.mxu0 0.0
        %601 = vmatprep.subr.mxu0 0.0
        %602 = vmatpush1.msra.mxu0 0.0
        %603 = vmatprep.subr.mxu0 0.0
        %604 = vmatpush1.msra.mxu0 0.0
        %605 = vmatprep.subr.mxu0 0.0
        %606 = vmatpush1.msra.mxu0 0.0
        %607 = vmatprep.subr.mxu0 0.0
        %608 = vmatpush1.msra.mxu0 0.0
        %609 = vmatprep.subr.mxu0 0.0
        %610 = vmatpush1.msra.mxu0 0.0
        %611 = vmatprep.subr.mxu0 0.0
        %612 = vmatpush1.msra.mxu0 0.0
        %613 = vmatprep.subr.mxu0 0.0
        %614 = vmatpush1.msra.mxu0 0.0
        %615 = vmatprep.subr.mxu0 0.0
        %616 = vmatpush1.msra.mxu0 0.0
        %617 = vmatprep.subr.mxu0 0.0
        %618 = vmatpush1.msra.mxu0 0.0
        %619 = vmatprep.subr.mxu0 0.0
        %620 = vmatpush1.msra.mxu0 0.0
        %621 = vmatprep.subr.mxu0 0.0
        %622 = vmatpush1.msra.mxu0 0.0
        %623 = vmatprep.subr.mxu0 0.0
        %624 = vmatpush1.msra.mxu0 0.0
        %625 = vmatprep.subr.mxu0 0.0
        %626 = vmatpush1.msra.mxu0 0.0
        %627 = vmatprep.subr.mxu0 0.0
        %628 = vmatpush1.msra.mxu0 0.0
        %629 = vmatprep.subr.mxu0 0.0
        %630 = vmatpush1.msra.mxu0 0.0
        %631 = vmatprep.subr.mxu0 0.0
        %632 = vmatpush1.msra.mxu0 0.0
        %633 = vmatprep.subr.mxu0 0.0
        %634 = vmatpush1.msra.mxu0 0.0
        %635 = vmatprep.subr.mxu0 0.0
        %636 = vmatpush1.msra.mxu0 0.0
        %637 = vmatprep.subr.mxu0 0.0
        %638 = vmatpush1.msra.mxu0 0.0
        %639 = vmatprep.subr.mxu0 0.0
        %640 = vmatpush1.msra.mxu0 0.0
        %641 = vmatprep.subr.mxu0 0.0
        %642 = vmatpush1.msra.mxu0 0.0
        %643 = vmatprep.mubr.f32.mxu0 0.0
        %644 = vmatmul.mubr.f32.gmra.mrb[0].mxu0 %v577
        %v645 = vpop.f32.mrb[0].mxu0
        %v646 = vadd.f32 %v573, %v645
        %v647 = vpop.f32.mrb[0].mxu0
        %648 = vdwg.mxu0
        %v649 = vld [vmem:[#allocation10] sm:$0xff]
        %v650 = vld [vmem:[#allocation10 + $0x8] sm:$0xff]
        %v651 = vld [vmem:[#allocation10 + $0x10] sm:$0xff]
        %v652 = vld [vmem:[#allocation10 + $0x18] sm:$0xff]
        %v653 = vld [vmem:[%s6] sm:$0x1]
        %v655 = vlaneseq
        %v656 = vshrl.u32 %v655, 7
        %v657 = vsub.s32 0, %v656
        %v658 = vrot.slane %v653, %v657
        %v661 = vsel %vm575, %v562, 0
        %663 = vmatprep.subr.mxu0 0.0
        %664 = vmatpush1.msra.mxu0 %v649
        %665 = vmatprep.subr.mxu0 0.0
        %666 = vmatpush1.msra.mxu0 %v650
        %667 = vmatprep.subr.mxu0 0.0
        %668 = vmatpush1.msra.mxu0 %v651
        %669 = vmatprep.subr.mxu0 0.0
        %670 = vmatpush1.msra.mxu0 %v652
        %671 = vmatprep.subr.mxu0 0.0
        %672 = vmatpush1.msra.mxu0 0.0
        %673 = vmatprep.subr.mxu0 0.0
        %674 = vmatpush1.msra.mxu0 0.0
        %675 = vmatprep.subr.mxu0 0.0
        %676 = vmatpush1.msra.mxu0 0.0
        %677 = vmatprep.subr.mxu0 0.0
        %678 = vmatpush1.msra.mxu0 0.0
        %679 = vmatprep.subr.mxu0 0.0
        %680 = vmatpush1.msra.mxu0 0.0
        %681 = vmatprep.subr.mxu0 0.0
        %682 = vmatpush1.msra.mxu0 0.0
        %683 = vmatprep.subr.mxu0 0.0
        %684 = vmatpush1.msra.mxu0 0.0
        %685 = vmatprep.subr.mxu0 0.0
        %686 = vmatpush1.msra.mxu0 0.0
        %687 = vmatprep.subr.mxu0 0.0
        %688 = vmatpush1.msra.mxu0 0.0
        %689 = vmatprep.subr.mxu0 0.0
        %690 = vmatpush1.msra.mxu0 0.0
        %691 = vmatprep.subr.mxu0 0.0
        %692 = vmatpush1.msra.mxu0 0.0
        %693 = vmatprep.subr.mxu0 0.0
        %694 = vmatpush1.msra.mxu0 0.0
        %695 = vmatprep.subr.mxu0 0.0
        %696 = vmatpush1.msra.mxu0 0.0
        %697 = vmatprep.subr.mxu0 0.0
        %698 = vmatpush1.msra.mxu0 0.0
        %699 = vmatprep.subr.mxu0 0.0
        %700 = vmatpush1.msra.mxu0 0.0
        %701 = vmatprep.subr.mxu0 0.0
        %702 = vmatpush1.msra.mxu0 0.0
        %703 = vmatprep.subr.mxu0 0.0
        %704 = vmatpush1.msra.mxu0 0.0
        %705 = vmatprep.subr.mxu0 0.0
        %706 = vmatpush1.msra.mxu0 0.0
        %707 = vmatprep.subr.mxu0 0.0
        %708 = vmatpush1.msra.mxu0 0.0
        %709 = vmatprep.subr.mxu0 0.0
        %710 = vmatpush1.msra.mxu0 0.0
        %711 = vmatprep.subr.mxu0 0.0
        %712 = vmatpush1.msra.mxu0 0.0
        %713 = vmatprep.subr.mxu0 0.0
        %714 = vmatpush1.msra.mxu0 0.0
        %715 = vmatprep.subr.mxu0 0.0
        %716 = vmatpush1.msra.mxu0 0.0
        %717 = vmatprep.subr.mxu0 0.0
        %718 = vmatpush1.msra.mxu0 0.0
        %719 = vmatprep.subr.mxu0 0.0
        %720 = vmatpush1.msra.mxu0 0.0
        %721 = vmatprep.subr.mxu0 0.0
        %722 = vmatpush1.msra.mxu0 0.0
        %723 = vmatprep.subr.mxu0 0.0
        %724 = vmatpush1.msra.mxu0 0.0
        %725 = vmatprep.subr.mxu0 0.0
        %726 = vmatpush1.msra.mxu0 0.0
        %727 = vmatprep.mubr.f32.mxu0 0.0
        %728 = vmatmul.mubr.f32.gmra.mrb[0].mxu0 %v661
        %v729 = vpop.f32.mrb[0].mxu0
        %v730 = vadd.f32 %v658, %v729
        %v731 = vpop.f32.mrb[0].mxu0
        %732 = vdwg.mxu0
        %v733 = vld [vmem:[#allocation11] sm:$0xff]
        %v734 = vld [vmem:[#allocation11 + $0x8] sm:$0xff]
        %v735 = vld [vmem:[#allocation11 + $0x10] sm:$0xff]
        %v736 = vld [vmem:[#allocation11 + $0x18] sm:$0xff]
        %v737 = vld [vmem:[#allocation13] sm:$0x1]
        %v739 = vlaneseq
        %v740 = vshrl.u32 %v739, 7
        %v741 = vsub.s32 0, %v740
        %v742 = vrot.slane %v737, %v741
        %744 = vmatprep.subr.mxu0 0.0
        %745 = vmatpush1.msra.mxu0 %v733
        %746 = vmatprep.subr.mxu0 0.0
        %747 = vmatpush1.msra.mxu0 %v734
        %748 = vmatprep.subr.mxu0 0.0
        %749 = vmatpush1.msra.mxu0 %v735
        %750 = vmatprep.subr.mxu0 0.0
        %751 = vmatpush1.msra.mxu0 %v736
        %752 = vmatprep.subr.mxu0 0.0
        %753 = vmatpush1.msra.mxu0 0.0
        %754 = vmatprep.subr.mxu0 0.0
        %755 = vmatpush1.msra.mxu0 0.0
        %756 = vmatprep.subr.mxu0 0.0
        %757 = vmatpush1.msra.mxu0 0.0
        %758 = vmatprep.subr.mxu0 0.0
        %759 = vmatpush1.msra.mxu0 0.0
        %760 = vmatprep.subr.mxu0 0.0
        %761 = vmatpush1.msra.mxu0 0.0
        %762 = vmatprep.subr.mxu0 0.0
        %763 = vmatpush1.msra.mxu0 0.0
        %764 = vmatprep.subr.mxu0 0.0
        %765 = vmatpush1.msra.mxu0 0.0
        %766 = vmatprep.subr.mxu0 0.0
        %767 = vmatpush1.msra.mxu0 0.0
        %768 = vmatprep.subr.mxu0 0.0
        %769 = vmatpush1.msra.mxu0 0.0
        %770 = vmatprep.subr.mxu0 0.0
        %771 = vmatpush1.msra.mxu0 0.0
        %772 = vmatprep.subr.mxu0 0.0
        %773 = vmatpush1.msra.mxu0 0.0
        %774 = vmatprep.subr.mxu0 0.0
        %775 = vmatpush1.msra.mxu0 0.0
        %776 = vmatprep.subr.mxu0 0.0
        %777 = vmatpush1.msra.mxu0 0.0
        %778 = vmatprep.subr.mxu0 0.0
        %779 = vmatpush1.msra.mxu0 0.0
        %780 = vmatprep.subr.mxu0 0.0
        %781 = vmatpush1.msra.mxu0 0.0
        %782 = vmatprep.subr.mxu0 0.0
        %783 = vmatpush1.msra.mxu0 0.0
        %784 = vmatprep.subr.mxu0 0.0
        %785 = vmatpush1.msra.mxu0 0.0
        %786 = vmatprep.subr.mxu0 0.0
        %787 = vmatpush1.msra.mxu0 0.0
        %788 = vmatprep.subr.mxu0 0.0
        %789 = vmatpush1.msra.mxu0 0.0
        %790 = vmatprep.subr.mxu0 0.0
        %791 = vmatpush1.msra.mxu0 0.0
        %792 = vmatprep.subr.mxu0 0.0
        %793 = vmatpush1.msra.mxu0 0.0
        %794 = vmatprep.subr.mxu0 0.0
        %795 = vmatpush1.msra.mxu0 0.0
        %796 = vmatprep.subr.mxu0 0.0
        %797 = vmatpush1.msra.mxu0 0.0
        %798 = vmatprep.subr.mxu0 0.0
        %799 = vmatpush1.msra.mxu0 0.0
        %800 = vmatprep.subr.mxu0 0.0
        %801 = vmatpush1.msra.mxu0 0.0
        %802 = vmatprep.subr.mxu0 0.0
        %803 = vmatpush1.msra.mxu0 0.0
        %804 = vmatprep.subr.mxu0 0.0
        %805 = vmatpush1.msra.mxu0 0.0
        %806 = vmatprep.subr.mxu0 0.0
        %807 = vmatpush1.msra.mxu0 0.0
        %808 = vmatprep.mubr.f32.mxu0 0.0
        %809 = vmatmul.mubr.f32.gmra.mrb[0].mxu0 %v661
        %v810 = vpop.f32.mrb[0].mxu0
        %v811 = vadd.f32 %v742, %v810
        %v812 = vpop.f32.mrb[0].mxu0
        %813 = vdwg.mxu0
        %v814 = vld [vmem:[%s9] sm:$0xff]
        %v815 = vld [vmem:[%s9 + $0x8] sm:$0xff]
        %v816 = vld [vmem:[%s9 + $0x10] sm:$0xff]
        %v817 = vld [vmem:[%s9 + $0x18] sm:$0xff]
        %vm818 = vcmask 64512
        %v820 = vsel %vm818, %v646, 0
        %v823 = vsel %vm818, %v730, 0
        %825 = vmatprep.subr.mxu0 0.0
        %826 = vmatpush1.xpose.msra.mxu0 %v823
        %827 = vmatprep.subr.mxu0 0.0
        %828 = vmatpush1.xpose.msra.mxu0 0.0
        %829 = vmatprep.subr.mxu0 0.0
        %830 = vmatpush1.xpose.msra.mxu0 0.0
        %831 = vmatprep.subr.mxu0 0.0
        %832 = vmatpush1.xpose.msra.mxu0 0.0
        %833 = vmatprep.subr.mxu0 0.0
        %834 = vmatpush1.xpose.msra.mxu0 0.0
        %835 = vmatprep.subr.mxu0 0.0
        %836 = vmatpush1.xpose.msra.mxu0 0.0
        %837 = vmatprep.subr.mxu0 0.0
        %838 = vmatpush1.xpose.msra.mxu0 0.0
        %839 = vmatprep.subr.mxu0 0.0
        %840 = vmatpush1.xpose.msra.mxu0 0.0
        %841 = vmatprep.subr.mxu0 0.0
        %842 = vmatpush1.xpose.msra.mxu0 0.0
        %843 = vmatprep.subr.mxu0 0.0
        %844 = vmatpush1.xpose.msra.mxu0 0.0
        %845 = vmatprep.subr.mxu0 0.0
        %846 = vmatpush1.xpose.msra.mxu0 0.0
        %847 = vmatprep.subr.mxu0 0.0
        %848 = vmatpush1.xpose.msra.mxu0 0.0
        %849 = vmatprep.subr.mxu0 0.0
        %850 = vmatpush1.xpose.msra.mxu0 0.0
        %851 = vmatprep.subr.mxu0 0.0
        %852 = vmatpush1.xpose.msra.mxu0 0.0
        %853 = vmatprep.subr.mxu0 0.0
        %854 = vmatpush1.xpose.msra.mxu0 0.0
        %855 = vmatprep.subr.mxu0 0.0
        %856 = vmatpush1.xpose.msra.mxu0 0.0
        %857 = vmatprep.subr.mxu0 0.0
        %858 = vmatpush1.xpose.msra.mxu0 0.0
        %859 = vmatprep.subr.mxu0 0.0
        %860 = vmatpush1.xpose.msra.mxu0 0.0
        %861 = vmatprep.subr.mxu0 0.0
        %862 = vmatpush1.xpose.msra.mxu0 0.0
        %863 = vmatprep.subr.mxu0 0.0
        %864 = vmatpush1.xpose.msra.mxu0 0.0
        %865 = vmatprep.subr.mxu0 0.0
        %866 = vmatpush1.xpose.msra.mxu0 0.0
        %867 = vmatprep.subr.mxu0 0.0
        %868 = vmatpush1.xpose.msra.mxu0 0.0
        %869 = vmatprep.subr.mxu0 0.0
        %870 = vmatpush1.xpose.msra.mxu0 0.0
        %871 = vmatprep.subr.mxu0 0.0
        %872 = vmatpush1.xpose.msra.mxu0 0.0
        %873 = vmatprep.subr.mxu0 0.0
        %874 = vmatpush1.xpose.msra.mxu0 0.0
        %875 = vmatprep.subr.mxu0 0.0
        %876 = vmatpush1.xpose.msra.mxu0 0.0
        %877 = vmatprep.subr.mxu0 0.0
        %878 = vmatpush1.xpose.msra.mxu0 0.0
        %879 = vmatprep.subr.mxu0 0.0
        %880 = vmatpush1.xpose.msra.mxu0 0.0
        %881 = vmatprep.subr.mxu0 0.0
        %882 = vmatpush1.xpose.msra.mxu0 0.0
        %883 = vmatprep.subr.mxu0 0.0
        %884 = vmatpush1.xpose.msra.mxu0 0.0
        %885 = vmatprep.subr.mxu0 0.0
        %886 = vmatpush1.xpose.msra.mxu0 0.0
        %887 = vmatprep.subr.mxu0 0.0
        %888 = vmatpush1.xpose.msra.mxu0 0.0
        %889 = vmatprep.mubr.f32.mxu0 0.0
        %890 = vmatmul.mubr.f32.gmra.mrb[0].mxu0 %v820
        %v891 = vpop.f32.mrb[0].mxu0
        %v892 = vadd.f32 0.0, %v891
        %v893 = vpop.f32.mrb[0].mxu0
        %894 = vdwg.mxu0
        %v895 = vmul.f32 %v892, 0.35355338
        %vm896 = vcmp.gt.f32.partialorder %v563, 0.0
        %v897 = vsel %vm896, %v895, -1e+09
        %v898 = vsel %vm818, %v897, -inf
        %899 = vmax.xlane.f32.xlu0 %v898
        %v900 = vpop.xlane.xlu0 %899
        %v901 = vsub.f32 %v897, %v900
        %v902 = vmul.f32 %v901, 1.442695
        %v903 = vpow.pop %v902
        %v904 = vsel %vm818, %v903, 0.0
        %905 = vadd.xlane.f32.xlu0 %v904
        %v906 = vpop.xlane.xlu0 %905
        %v907 = vrcp.pop %v906
        %v908 = vmul.f32 %v903, %v907
        %v910 = vsel %vm818, %v908, 0
        %912 = vmatprep.subr.mxu0 0.0
        %913 = vmatpush1.msra.mxu0 %v811
        %914 = vmatprep.subr.mxu0 0.0
        %915 = vmatpush1.msra.mxu0 0.0
        %916 = vmatprep.subr.mxu0 0.0
        %917 = vmatpush1.msra.mxu0 0.0
        %918 = vmatprep.subr.mxu0 0.0
        %919 = vmatpush1.msra.mxu0 0.0
        %920 = vmatprep.subr.mxu0 0.0
        %921 = vmatpush1.msra.mxu0 0.0
        %922 = vmatprep.subr.mxu0 0.0
        %923 = vmatpush1.msra.mxu0 0.0
        %924 = vmatprep.subr.mxu0 0.0
        %925 = vmatpush1.msra.mxu0 0.0
        %926 = vmatprep.subr.mxu0 0.0
        %927 = vmatpush1.msra.mxu0 0.0
        %928 = vmatprep.subr.mxu0 0.0
        %929 = vmatpush1.msra.mxu0 0.0
        %930 = vmatprep.subr.mxu0 0.0
        %931 = vmatpush1.msra.mxu0 0.0
        %932 = vmatprep.subr.mxu0 0.0
        %933 = vmatpush1.msra.mxu0 0.0
        %934 = vmatprep.subr.mxu0 0.0
        %935 = vmatpush1.msra.mxu0 0.0
        %936 = vmatprep.subr.mxu0 0.0
        %937 = vmatpush1.msra.mxu0 0.0
        %938 = vmatprep.subr.mxu0 0.0
        %939 = vmatpush1.msra.mxu0 0.0
        %940 = vmatprep.subr.mxu0 0.0
        %941 = vmatpush1.msra.mxu0 0.0
        %942 = vmatprep.subr.mxu0 0.0
        %943 = vmatpush1.msra.mxu0 0.0
        %944 = vmatprep.subr.mxu0 0.0
        %945 = vmatpush1.msra.mxu0 0.0
        %946 = vmatprep.subr.mxu0 0.0
        %947 = vmatpush1.msra.mxu0 0.0
        %948 = vmatprep.subr.mxu0 0.0
        %949 = vmatpush1.msra.mxu0 0.0
        %950 = vmatprep.subr.mxu0 0.0
        %951 = vmatpush1.msra.mxu0 0.0
        %952 = vmatprep.subr.mxu0 0.0
        %953 = vmatpush1.msra.mxu0 0.0
        %954 = vmatprep.subr.mxu0 0.0
        %955 = vmatpush1.msra.mxu0 0.0
        %956 = vmatprep.subr.mxu0 0.0
        %957 = vmatpush1.msra.mxu0 0.0
        %958 = vmatprep.subr.mxu0 0.0
        %959 = vmatpush1.msra.mxu0 0.0
        %960 = vmatprep.subr.mxu0 0.0
        %961 = vmatpush1.msra.mxu0 0.0
        %962 = vmatprep.subr.mxu0 0.0
        %963 = vmatpush1.msra.mxu0 0.0
        %964 = vmatprep.subr.mxu0 0.0
        %965 = vmatpush1.msra.mxu0 0.0
        %966 = vmatprep.subr.mxu0 0.0
        %967 = vmatpush1.msra.mxu0 0.0
        %968 = vmatprep.subr.mxu0 0.0
        %969 = vmatpush1.msra.mxu0 0.0
        %970 = vmatprep.subr.mxu0 0.0
        %971 = vmatpush1.msra.mxu0 0.0
        %972 = vmatprep.subr.mxu0 0.0
        %973 = vmatpush1.msra.mxu0 0.0
        %974 = vmatprep.subr.mxu0 0.0
        %975 = vmatpush1.msra.mxu0 0.0
        %976 = vmatprep.mubr.f32.mxu0 0.0
        %977 = vmatmul.mubr.f32.gmra.mrb[0].mxu0 %v910
        %v978 = vpop.f32.mrb[0].mxu0
        %v979 = vadd.f32 0.0, %v978
        %v980 = vpop.f32.mrb[0].mxu0
        %981 = vdwg.mxu0
        %982 = vrot.lane.b32.xlu0 %v646, 120
        %v983 = vpop.permute.xlu0 %982
        %984 = vrot.lane.b32.xlu0 %v730, 120
        %v985 = vpop.permute.xlu0 %984
        %v986 = vsel %vm818, %v983, 0
        %v988 = vsel %vm818, %v985, 0
        %990 = vmatprep.subr.mxu0 0.0
        %991 = vmatpush1.xpose.msra.mxu0 %v988
        %992 = vmatprep.subr.mxu0 0.0
        %993 = vmatpush1.xpose.msra.mxu0 0.0
        %994 = vmatprep.subr.mxu0 0.0
        %995 = vmatpush1.xpose.msra.mxu0 0.0
        %996 = vmatprep.subr.mxu0 0.0
        %997 = vmatpush1.xpose.msra.mxu0 0.0
        %998 = vmatprep.subr.mxu0 0.0
        %999 = vmatpush1.xpose.msra.mxu0 0.0
        %1000 = vmatprep.subr.mxu0 0.0
        %1001 = vmatpush1.xpose.msra.mxu0 0.0
        %1002 = vmatprep.subr.mxu0 0.0
        %1003 = vmatpush1.xpose.msra.mxu0 0.0
        %1004 = vmatprep.subr.mxu0 0.0
        %1005 = vmatpush1.xpose.msra.mxu0 0.0
        %1006 = vmatprep.subr.mxu0 0.0
        %1007 = vmatpush1.xpose.msra.mxu0 0.0
        %1008 = vmatprep.subr.mxu0 0.0
        %1009 = vmatpush1.xpose.msra.mxu0 0.0
        %1010 = vmatprep.subr.mxu0 0.0
        %1011 = vmatpush1.xpose.msra.mxu0 0.0
        %1012 = vmatprep.subr.mxu0 0.0
        %1013 = vmatpush1.xpose.msra.mxu0 0.0
        %1014 = vmatprep.subr.mxu0 0.0
        %1015 = vmatpush1.xpose.msra.mxu0 0.0
        %1016 = vmatprep.subr.mxu0 0.0
        %1017 = vmatpush1.xpose.msra.mxu0 0.0
        %1018 = vmatprep.subr.mxu0 0.0
        %1019 = vmatpush1.xpose.msra.mxu0 0.0
        %1020 = vmatprep.subr.mxu0 0.0
        %1021 = vmatpush1.xpose.msra.mxu0 0.0
        %1022 = vmatprep.subr.mxu0 0.0
        %1023 = vmatpush1.xpose.msra.mxu0 0.0
        %1024 = vmatprep.subr.mxu0 0.0
        %1025 = vmatpush1.xpose.msra.mxu0 0.0
        %1026 = vmatprep.subr.mxu0 0.0
        %1027 = vmatpush1.xpose.msra.mxu0 0.0
        %1028 = vmatprep.subr.mxu0 0.0
        %1029 = vmatpush1.xpose.msra.mxu0 0.0
        %1030 = vmatprep.subr.mxu0 0.0
        %1031 = vmatpush1.xpose.msra.mxu0 0.0
        %1032 = vmatprep.subr.mxu0 0.0
        %1033 = vmatpush1.xpose.msra.mxu0 0.0
        %1034 = vmatprep.subr.mxu0 0.0
        %1035 = vmatpush1.xpose.msra.mxu0 0.0
        %1036 = vmatprep.subr.mxu0 0.0
        %1037 = vmatpush1.xpose.msra.mxu0 0.0
        %1038 = vmatprep.subr.mxu0 0.0
        %1039 = vmatpush1.xpose.msra.mxu0 0.0
        %1040 = vmatprep.subr.mxu0 0.0
        %1041 = vmatpush1.xpose.msra.mxu0 0.0
        %1042 = vmatprep.subr.mxu0 0.0
        %1043 = vmatpush1.xpose.msra.mxu0 0.0
        %1044 = vmatprep.subr.mxu0 0.0
        %1045 = vmatpush1.xpose.msra.mxu0 0.0
        %1046 = vmatprep.subr.mxu0 0.0
        %1047 = vmatpush1.xpose.msra.mxu0 0.0
        %1048 = vmatprep.subr.mxu0 0.0
        %1049 = vmatpush1.xpose.msra.mxu0 0.0
        %1050 = vmatprep.subr.mxu0 0.0
        %1051 = vmatpush1.xpose.msra.mxu0 0.0
        %1052 = vmatprep.subr.mxu0 0.0
        %1053 = vmatpush1.xpose.msra.mxu0 0.0
        %1054 = vmatprep.mubr.f32.mxu0 0.0
        %1055 = vmatmul.mubr.f32.gmra.mrb[0].mxu0 %v986
        %v1056 = vpop.f32.mrb[0].mxu0
        %v1057 = vadd.f32 0.0, %v1056
        %v1058 = vpop.f32.mrb[0].mxu0
        %1059 = vdwg.mxu0
        %v1060 = vmul.f32 %v1057, 0.35355338
        %v1061 = vsel %vm896, %v1060, -1e+09
        %v1062 = vsel %vm818, %v1061, -inf
        %1063 = vmax.xlane.f32.xlu0 %v1062
        %v1064 = vpop.xlane.xlu0 %1063
        %v1065 = vsub.f32 %v1061, %v1064
        %v1066 = vmul.f32 %v1065, 1.442695
        %v1067 = vpow.pop %v1066
        %v1068 = vsel %vm818, %v1067, 0.0
        %1069 = vadd.xlane.f32.xlu0 %v1068
        %v1070 = vpop.xlane.xlu0 %1069
        %v1071 = vrcp.pop %v1070
        %v1072 = vmul.f32 %v1067, %v1071
        %1074 = vrot.lane.b32.xlu0 %v811, 120
        %v1075 = vpop.permute.xlu0 %1074
        %v1078 = vsel %vm818, %v1072, 0
        %1080 = vmatprep.subr.mxu0 0.0
        %1081 = vmatpush1.msra.mxu0 %v1075
        %1082 = vmatprep.subr.mxu0 0.0
        %1083 = vmatpush1.msra.mxu0 0.0
        %1084 = vmatprep.subr.mxu0 0.0
        %1085 = vmatpush1.msra.mxu0 0.0
        %1086 = vmatprep.subr.mxu0 0.0
        %1087 = vmatpush1.msra.mxu0 0.0
        %1088 = vmatprep.subr.mxu0 0.0
        %1089 = vmatpush1.msra.mxu0 0.0
        %1090 = vmatprep.subr.mxu0 0.0
        %1091 = vmatpush1.msra.mxu0 0.0
        %1092 = vmatprep.subr.mxu0 0.0
        %1093 = vmatpush1.msra.mxu0 0.0
        %1094 = vmatprep.subr.mxu0 0.0
        %1095 = vmatpush1.msra.mxu0 0.0
        %1096 = vmatprep.subr.mxu0 0.0
        %1097 = vmatpush1.msra.mxu0 0.0
        %1098 = vmatprep.subr.mxu0 0.0
        %1099 = vmatpush1.msra.mxu0 0.0
        %1100 = vmatprep.subr.mxu0 0.0
        %1101 = vmatpush1.msra.mxu0 0.0
        %1102 = vmatprep.subr.mxu0 0.0
        %1103 = vmatpush1.msra.mxu0 0.0
        %1104 = vmatprep.subr.mxu0 0.0
        %1105 = vmatpush1.msra.mxu0 0.0
        %1106 = vmatprep.subr.mxu0 0.0
        %1107 = vmatpush1.msra.mxu0 0.0
        %1108 = vmatprep.subr.mxu0 0.0
        %1109 = vmatpush1.msra.mxu0 0.0
        %1110 = vmatprep.subr.mxu0 0.0
        %1111 = vmatpush1.msra.mxu0 0.0
        %1112 = vmatprep.subr.mxu0 0.0
        %1113 = vmatpush1.msra.mxu0 0.0
        %1114 = vmatprep.subr.mxu0 0.0
        %1115 = vmatpush1.msra.mxu0 0.0
        %1116 = vmatprep.subr.mxu0 0.0
        %1117 = vmatpush1.msra.mxu0 0.0
        %1118 = vmatprep.subr.mxu0 0.0
        %1119 = vmatpush1.msra.mxu0 0.0
        %1120 = vmatprep.subr.mxu0 0.0
        %1121 = vmatpush1.msra.mxu0 0.0
        %1122 = vmatprep.subr.mxu0 0.0
        %1123 = vmatpush1.msra.mxu0 0.0
        %1124 = vmatprep.subr.mxu0 0.0
        %1125 = vmatpush1.msra.mxu0 0.0
        %1126 = vmatprep.subr.mxu0 0.0
        %1127 = vmatpush1.msra.mxu0 0.0
        %1128 = vmatprep.subr.mxu0 0.0
        %1129 = vmatpush1.msra.mxu0 0.0
        %1130 = vmatprep.subr.mxu0 0.0
        %1131 = vmatpush1.msra.mxu0 0.0
        %1132 = vmatprep.subr.mxu0 0.0
        %1133 = vmatpush1.msra.mxu0 0.0
        %1134 = vmatprep.subr.mxu0 0.0
        %1135 = vmatpush1.msra.mxu0 0.0
        %1136 = vmatprep.subr.mxu0 0.0
        %1137 = vmatpush1.msra.mxu0 0.0
        %1138 = vmatprep.subr.mxu0 0.0
        %1139 = vmatpush1.msra.mxu0 0.0
        %1140 = vmatprep.subr.mxu0 0.0
        %1141 = vmatpush1.msra.mxu0 0.0
        %1142 = vmatprep.subr.mxu0 0.0
        %1143 = vmatpush1.msra.mxu0 0.0
        %1144 = vmatprep.mubr.f32.mxu0 0.0
        %1145 = vmatmul.mubr.f32.gmra.mrb[0].mxu0 %v1078
        %v1146 = vpop.f32.mrb[0].mxu0
        %v1147 = vadd.f32 0.0, %v1146
        %v1148 = vpop.f32.mrb[0].mxu0
        %1149 = vdwg.mxu0
        %v1151 = vsel %vm818, %v1147, 0
        %1153 = vmatprep.subr.mxu0 0.0
        %1154 = vmatpush1.msra.mxu0 %v815
        %1155 = vmatprep.subr.mxu0 0.0
        %1156 = vmatpush1.msra.mxu0 0.0
        %1157 = vmatprep.subr.mxu0 0.0
        %1158 = vmatpush1.msra.mxu0 0.0
        %1159 = vmatprep.subr.mxu0 0.0
        %1160 = vmatpush1.msra.mxu0 0.0
        %1161 = vmatprep.subr.mxu0 0.0
        %1162 = vmatpush1.msra.mxu0 0.0
        %1163 = vmatprep.subr.mxu0 0.0
        %1164 = vmatpush1.msra.mxu0 0.0
        %1165 = vmatprep.subr.mxu0 0.0
        %1166 = vmatpush1.msra.mxu0 0.0
        %1167 = vmatprep.subr.mxu0 0.0
        %1168 = vmatpush1.msra.mxu0 0.0
        %1169 = vmatprep.subr.mxu0 0.0
        %1170 = vmatpush1.msra.mxu0 0.0
        %1171 = vmatprep.subr.mxu0 0.0
        %1172 = vmatpush1.msra.mxu0 0.0
        %1173 = vmatprep.subr.mxu0 0.0
        %1174 = vmatpush1.msra.mxu0 0.0
        %1175 = vmatprep.subr.mxu0 0.0
        %1176 = vmatpush1.msra.mxu0 0.0
        %1177 = vmatprep.subr.mxu0 0.0
        %1178 = vmatpush1.msra.mxu0 0.0
        %1179 = vmatprep.subr.mxu0 0.0
        %1180 = vmatpush1.msra.mxu0 0.0
        %1181 = vmatprep.subr.mxu0 0.0
        %1182 = vmatpush1.msra.mxu0 0.0
        %1183 = vmatprep.subr.mxu0 0.0
        %1184 = vmatpush1.msra.mxu0 0.0
        %1185 = vmatprep.subr.mxu0 0.0
        %1186 = vmatpush1.msra.mxu0 0.0
        %1187 = vmatprep.subr.mxu0 0.0
        %1188 = vmatpush1.msra.mxu0 0.0
        %1189 = vmatprep.subr.mxu0 0.0
        %1190 = vmatpush1.msra.mxu0 0.0
        %1191 = vmatprep.subr.mxu0 0.0
        %1192 = vmatpush1.msra.mxu0 0.0
        %1193 = vmatprep.subr.mxu0 0.0
        %1194 = vmatpush1.msra.mxu0 0.0
        %1195 = vmatprep.subr.mxu0 0.0
        %1196 = vmatpush1.msra.mxu0 0.0
        %1197 = vmatprep.subr.mxu0 0.0
        %1198 = vmatpush1.msra.mxu0 0.0
        %1199 = vmatprep.subr.mxu0 0.0
        %1200 = vmatpush1.msra.mxu0 0.0
        %1201 = vmatprep.subr.mxu0 0.0
        %1202 = vmatpush1.msra.mxu0 0.0
        %1203 = vmatprep.subr.mxu0 0.0
        %1204 = vmatpush1.msra.mxu0 0.0
        %1205 = vmatprep.subr.mxu0 0.0
        %1206 = vmatpush1.msra.mxu0 0.0
        %1207 = vmatprep.subr.mxu0 0.0
        %1208 = vmatpush1.msra.mxu0 0.0
        %1209 = vmatprep.subr.mxu0 0.0
        %1210 = vmatpush1.msra.mxu0 0.0
        %1211 = vmatprep.subr.mxu0 0.0
        %1212 = vmatpush1.msra.mxu0 0.0
        %1213 = vmatprep.subr.mxu0 0.0
        %1214 = vmatpush1.msra.mxu0 0.0
        %1215 = vmatprep.subr.mxu0 0.0
        %1216 = vmatpush1.msra.mxu0 0.0
        %1217 = vmatprep.mubr.f32.mxu0 0.0
        %1218 = vmatmul.mubr.f32.gmra.mrb[0].mxu0 %v1151
        %v1219 = vpop.f32.mrb[0].mxu0
        %v1220 = vadd.f32 0.0, %v1219
        %v1221 = vpop.f32.mrb[0].mxu0
        %1222 = vdwg.mxu0
        %v1224 = vsel %vm818, %v979, 0
        %1226 = vmatprep.subr.mxu0 0.0
        %1227 = vmatpush1.msra.mxu0 %v814
        %1228 = vmatprep.subr.mxu0 0.0
        %1229 = vmatpush1.msra.mxu0 0.0
        %1230 = vmatprep.subr.mxu0 0.0
        %1231 = vmatpush1.msra.mxu0 0.0
        %1232 = vmatprep.subr.mxu0 0.0
        %1233 = vmatpush1.msra.mxu0 0.0
        %1234 = vmatprep.subr.mxu0 0.0
        %1235 = vmatpush1.msra.mxu0 0.0
        %1236 = vmatprep.subr.mxu0 0.0
        %1237 = vmatpush1.msra.mxu0 0.0
        %1238 = vmatprep.subr.mxu0 0.0
        %1239 = vmatpush1.msra.mxu0 0.0
        %1240 = vmatprep.subr.mxu0 0.0
        %1241 = vmatpush1.msra.mxu0 0.0
        %1242 = vmatprep.subr.mxu0 0.0
        %1243 = vmatpush1.msra.mxu0 0.0
        %1244 = vmatprep.subr.mxu0 0.0
        %1245 = vmatpush1.msra.mxu0 0.0
        %1246 = vmatprep.subr.mxu0 0.0
        %1247 = vmatpush1.msra.mxu0 0.0
        %1248 = vmatprep.subr.mxu0 0.0
        %1249 = vmatpush1.msra.mxu0 0.0
        %1250 = vmatprep.subr.mxu0 0.0
        %1251 = vmatpush1.msra.mxu0 0.0
        %1252 = vmatprep.subr.mxu0 0.0
        %1253 = vmatpush1.msra.mxu0 0.0
        %1254 = vmatprep.subr.mxu0 0.0
        %1255 = vmatpush1.msra.mxu0 0.0
        %1256 = vmatprep.subr.mxu0 0.0
        %1257 = vmatpush1.msra.mxu0 0.0
        %1258 = vmatprep.subr.mxu0 0.0
        %1259 = vmatpush1.msra.mxu0 0.0
        %1260 = vmatprep.subr.mxu0 0.0
        %1261 = vmatpush1.msra.mxu0 0.0
        %1262 = vmatprep.subr.mxu0 0.0
        %1263 = vmatpush1.msra.mxu0 0.0
        %1264 = vmatprep.subr.mxu0 0.0
        %1265 = vmatpush1.msra.mxu0 0.0
        %1266 = vmatprep.subr.mxu0 0.0
        %1267 = vmatpush1.msra.mxu0 0.0
        %1268 = vmatprep.subr.mxu0 0.0
        %1269 = vmatpush1.msra.mxu0 0.0
        %1270 = vmatprep.subr.mxu0 0.0
        %1271 = vmatpush1.msra.mxu0 0.0
        %1272 = vmatprep.subr.mxu0 0.0
        %1273 = vmatpush1.msra.mxu0 0.0
        %1274 = vmatprep.subr.mxu0 0.0
        %1275 = vmatpush1.msra.mxu0 0.0
        %1276 = vmatprep.subr.mxu0 0.0
        %1277 = vmatpush1.msra.mxu0 0.0
        %1278 = vmatprep.subr.mxu0 0.0
        %1279 = vmatpush1.msra.mxu0 0.0
        %1280 = vmatprep.subr.mxu0 0.0
        %1281 = vmatpush1.msra.mxu0 0.0
        %1282 = vmatprep.subr.mxu0 0.0
        %1283 = vmatpush1.msra.mxu0 0.0
        %1284 = vmatprep.subr.mxu0 0.0
        %1285 = vmatpush1.msra.mxu0 0.0
        %1286 = vmatprep.subr.mxu0 0.0
        %1287 = vmatpush1.msra.mxu0 0.0
        %1288 = vmatprep.subr.mxu0 0.0
        %1289 = vmatpush1.msra.mxu0 0.0
        %1290 = vmatprep.mubr.f32.mxu0 0.0
        %1291 = vmatmul.mubr.f32.gmra.mrb[0].mxu0 %v1224
        %v1292 = vpop.f32.mrb[0].mxu0
        %v1293 = vadd.f32 %v1220, %v1292
        %v1294 = vpop.f32.mrb[0].mxu0
        %1295 = vdwg.mxu0
        %1296 = vrot.lane.b32.xlu0 %v646, 112
        %v1297 = vpop.permute.xlu0 %1296
        %1298 = vrot.lane.b32.xlu0 %v730, 112
        %v1299 = vpop.permute.xlu0 %1298
        %v1300 = vsel %vm818, %v1297, 0
        %v1302 = vsel %vm818, %v1299, 0
        %1304 = vmatprep.subr.mxu0 0.0
        %1305 = vmatpush1.xpose.msra.mxu0 %v1302
        %1306 = vmatprep.subr.mxu0 0.0
        %1307 = vmatpush1.xpose.msra.mxu0 0.0
        %1308 = vmatprep.subr.mxu0 0.0
        %1309 = vmatpush1.xpose.msra.mxu0 0.0
        %1310 = vmatprep.subr.mxu0 0.0
        %1311 = vmatpush1.xpose.msra.mxu0 0.0
        %1312 = vmatprep.subr.mxu0 0.0
        %1313 = vmatpush1.xpose.msra.mxu0 0.0
        %1314 = vmatprep.subr.mxu0 0.0
        %1315 = vmatpush1.xpose.msra.mxu0 0.0
        %1316 = vmatprep.subr.mxu0 0.0
        %1317 = vmatpush1.xpose.msra.mxu0 0.0
        %1318 = vmatprep.subr.mxu0 0.0
        %1319 = vmatpush1.xpose.msra.mxu0 0.0
        %1320 = vmatprep.subr.mxu0 0.0
        %1321 = vmatpush1.xpose.msra.mxu0 0.0
        %1322 = vmatprep.subr.mxu0 0.0
        %1323 = vmatpush1.xpose.msra.mxu0 0.0
        %1324 = vmatprep.subr.mxu0 0.0
        %1325 = vmatpush1.xpose.msra.mxu0 0.0
        %1326 = vmatprep.subr.mxu0 0.0
        %1327 = vmatpush1.xpose.msra.mxu0 0.0
        %1328 = vmatprep.subr.mxu0 0.0
        %1329 = vmatpush1.xpose.msra.mxu0 0.0
        %1330 = vmatprep.subr.mxu0 0.0
        %1331 = vmatpush1.xpose.msra.mxu0 0.0
        %1332 = vmatprep.subr.mxu0 0.0
        %1333 = vmatpush1.xpose.msra.mxu0 0.0
        %1334 = vmatprep.subr.mxu0 0.0
        %1335 = vmatpush1.xpose.msra.mxu0 0.0
        %1336 = vmatprep.subr.mxu0 0.0
        %1337 = vmatpush1.xpose.msra.mxu0 0.0
        %1338 = vmatprep.subr.mxu0 0.0
        %1339 = vmatpush1.xpose.msra.mxu0 0.0
        %1340 = vmatprep.subr.mxu0 0.0
        %1341 = vmatpush1.xpose.msra.mxu0 0.0
        %1342 = vmatprep.subr.mxu0 0.0
        %1343 = vmatpush1.xpose.msra.mxu0 0.0
        %1344 = vmatprep.subr.mxu0 0.0
        %1345 = vmatpush1.xpose.msra.mxu0 0.0
        %1346 = vmatprep.subr.mxu0 0.0
        %1347 = vmatpush1.xpose.msra.mxu0 0.0
        %1348 = vmatprep.subr.mxu0 0.0
        %1349 = vmatpush1.xpose.msra.mxu0 0.0
        %1350 = vmatprep.subr.mxu0 0.0
        %1351 = vmatpush1.xpose.msra.mxu0 0.0
        %1352 = vmatprep.subr.mxu0 0.0
        %1353 = vmatpush1.xpose.msra.mxu0 0.0
        %1354 = vmatprep.subr.mxu0 0.0
        %1355 = vmatpush1.xpose.msra.mxu0 0.0
        %1356 = vmatprep.subr.mxu0 0.0
        %1357 = vmatpush1.xpose.msra.mxu0 0.0
        %1358 = vmatprep.subr.mxu0 0.0
        %1359 = vmatpush1.xpose.msra.mxu0 0.0
        %1360 = vmatprep.subr.mxu0 0.0
        %1361 = vmatpush1.xpose.msra.mxu0 0.0
        %1362 = vmatprep.subr.mxu0 0.0
        %1363 = vmatpush1.xpose.msra.mxu0 0.0
        %1364 = vmatprep.subr.mxu0 0.0
        %1365 = vmatpush1.xpose.msra.mxu0 0.0
        %1366 = vmatprep.subr.mxu0 0.0
        %1367 = vmatpush1.xpose.msra.mxu0 0.0
        %1368 = vmatprep.mubr.f32.mxu0 0.0
        %1369 = vmatmul.mubr.f32.gmra.mrb[0].mxu0 %v1300
        %v1370 = vpop.f32.mrb[0].mxu0
        %v1371 = vadd.f32 0.0, %v1370
        %v1372 = vpop.f32.mrb[0].mxu0
        %1373 = vdwg.mxu0
        %v1374 = vmul.f32 %v1371, 0.35355338
        %v1375 = vsel %vm896, %v1374, -1e+09
        %v1376 = vsel %vm818, %v1375, -inf
        %1377 = vmax.xlane.f32.xlu0 %v1376
        %v1378 = vpop.xlane.xlu0 %1377
        %v1379 = vsub.f32 %v1375, %v1378
        %v1380 = vmul.f32 %v1379, 1.442695
        %v1381 = vpow.pop %v1380
        %v1382 = vsel %vm818, %v1381, 0.0
        %1383 = vadd.xlane.f32.xlu0 %v1382
        %v1384 = vpop.xlane.xlu0 %1383
        %v1385 = vrcp.pop %v1384
        %v1386 = vmul.f32 %v1381, %v1385
        %1387 = vrot.lane.b32.xlu0 %v811, 112
        %v1388 = vpop.permute.xlu0 %1387
        %v1391 = vsel %vm818, %v1386, 0
        %1393 = vmatprep.subr.mxu0 0.0
        %1394 = vmatpush1.msra.mxu0 %v1388
        %1395 = vmatprep.subr.mxu0 0.0
        %1396 = vmatpush1.msra.mxu0 0.0
        %1397 = vmatprep.subr.mxu0 0.0
        %1398 = vmatpush1.msra.mxu0 0.0
        %1399 = vmatprep.subr.mxu0 0.0
        %1400 = vmatpush1.msra.mxu0 0.0
        %1401 = vmatprep.subr.mxu0 0.0
        %1402 = vmatpush1.msra.mxu0 0.0
        %1403 = vmatprep.subr.mxu0 0.0
        %1404 = vmatpush1.msra.mxu0 0.0
        %1405 = vmatprep.subr.mxu0 0.0
        %1406 = vmatpush1.msra.mxu0 0.0
        %1407 = vmatprep.subr.mxu0 0.0
        %1408 = vmatpush1.msra.mxu0 0.0
        %1409 = vmatprep.subr.mxu0 0.0
        %1410 = vmatpush1.msra.mxu0 0.0
        %1411 = vmatprep.subr.mxu0 0.0
        %1412 = vmatpush1.msra.mxu0 0.0
        %1413 = vmatprep.subr.mxu0 0.0
        %1414 = vmatpush1.msra.mxu0 0.0
        %1415 = vmatprep.subr.mxu0 0.0
        %1416 = vmatpush1.msra.mxu0 0.0
        %1417 = vmatprep.subr.mxu0 0.0
        %1418 = vmatpush1.msra.mxu0 0.0
        %1419 = vmatprep.subr.mxu0 0.0
        %1420 = vmatpush1.msra.mxu0 0.0
        %1421 = vmatprep.subr.mxu0 0.0
        %1422 = vmatpush1.msra.mxu0 0.0
        %1423 = vmatprep.subr.mxu0 0.0
        %1424 = vmatpush1.msra.mxu0 0.0
        %1425 = vmatprep.subr.mxu0 0.0
        %1426 = vmatpush1.msra.mxu0 0.0
        %1427 = vmatprep.subr.mxu0 0.0
        %1428 = vmatpush1.msra.mxu0 0.0
        %1429 = vmatprep.subr.mxu0 0.0
        %1430 = vmatpush1.msra.mxu0 0.0
        %1431 = vmatprep.subr.mxu0 0.0
        %1432 = vmatpush1.msra.mxu0 0.0
        %1433 = vmatprep.subr.mxu0 0.0
        %1434 = vmatpush1.msra.mxu0 0.0
        %1435 = vmatprep.subr.mxu0 0.0
        %1436 = vmatpush1.msra.mxu0 0.0
        %1437 = vmatprep.subr.mxu0 0.0
        %1438 = vmatpush1.msra.mxu0 0.0
        %1439 = vmatprep.subr.mxu0 0.0
        %1440 = vmatpush1.msra.mxu0 0.0
        %1441 = vmatprep.subr.mxu0 0.0
        %1442 = vmatpush1.msra.mxu0 0.0
        %1443 = vmatprep.subr.mxu0 0.0
        %1444 = vmatpush1.msra.mxu0 0.0
        %1445 = vmatprep.subr.mxu0 0.0
        %1446 = vmatpush1.msra.mxu0 0.0
        %1447 = vmatprep.subr.mxu0 0.0
        %1448 = vmatpush1.msra.mxu0 0.0
        %1449 = vmatprep.subr.mxu0 0.0
        %1450 = vmatpush1.msra.mxu0 0.0
        %1451 = vmatprep.subr.mxu0 0.0
        %1452 = vmatpush1.msra.mxu0 0.0
        %1453 = vmatprep.subr.mxu0 0.0
        %1454 = vmatpush1.msra.mxu0 0.0
        %1455 = vmatprep.subr.mxu0 0.0
        %1456 = vmatpush1.msra.mxu0 0.0
        %1457 = vmatprep.mubr.f32.mxu0 0.0
        %1458 = vmatmul.mubr.f32.gmra.mrb[0].mxu0 %v1391
        %v1459 = vpop.f32.mrb[0].mxu0
        %v1460 = vadd.f32 0.0, %v1459
        %v1461 = vpop.f32.mrb[0].mxu0
        %1462 = vdwg.mxu0
        %v1464 = vsel %vm818, %v1460, 0
        %1466 = vmatprep.subr.mxu0 0.0
        %1467 = vmatpush1.msra.mxu0 %v816
        %1468 = vmatprep.subr.mxu0 0.0
        %1469 = vmatpush1.msra.mxu0 0.0
        %1470 = vmatprep.subr.mxu0 0.0
        %1471 = vmatpush1.msra.mxu0 0.0
        %1472 = vmatprep.subr.mxu0 0.0
        %1473 = vmatpush1.msra.mxu0 0.0
        %1474 = vmatprep.subr.mxu0 0.0
        %1475 = vmatpush1.msra.mxu0 0.0
        %1476 = vmatprep.subr.mxu0 0.0
        %1477 = vmatpush1.msra.mxu0 0.0
        %1478 = vmatprep.subr.mxu0 0.0
        %1479 = vmatpush1.msra.mxu0 0.0
        %1480 = vmatprep.subr.mxu0 0.0
        %1481 = vmatpush1.msra.mxu0 0.0
        %1482 = vmatprep.subr.mxu0 0.0
        %1483 = vmatpush1.msra.mxu0 0.0
        %1484 = vmatprep.subr.mxu0 0.0
        %1485 = vmatpush1.msra.mxu0 0.0
        %1486 = vmatprep.subr.mxu0 0.0
        %1487 = vmatpush1.msra.mxu0 0.0
        %1488 = vmatprep.subr.mxu0 0.0
        %1489 = vmatpush1.msra.mxu0 0.0
        %1490 = vmatprep.subr.mxu0 0.0
        %1491 = vmatpush1.msra.mxu0 0.0
        %1492 = vmatprep.subr.mxu0 0.0
        %1493 = vmatpush1.msra.mxu0 0.0
        %1494 = vmatprep.subr.mxu0 0.0
        %1495 = vmatpush1.msra.mxu0 0.0
        %1496 = vmatprep.subr.mxu0 0.0
        %1497 = vmatpush1.msra.mxu0 0.0
        %1498 = vmatprep.subr.mxu0 0.0
        %1499 = vmatpush1.msra.mxu0 0.0
        %1500 = vmatprep.subr.mxu0 0.0
        %1501 = vmatpush1.msra.mxu0 0.0
        %1502 = vmatprep.subr.mxu0 0.0
        %1503 = vmatpush1.msra.mxu0 0.0
        %1504 = vmatprep.subr.mxu0 0.0
        %1505 = vmatpush1.msra.mxu0 0.0
        %1506 = vmatprep.subr.mxu0 0.0
        %1507 = vmatpush1.msra.mxu0 0.0
        %1508 = vmatprep.subr.mxu0 0.0
        %1509 = vmatpush1.msra.mxu0 0.0
        %1510 = vmatprep.subr.mxu0 0.0
        %1511 = vmatpush1.msra.mxu0 0.0
        %1512 = vmatprep.subr.mxu0 0.0
        %1513 = vmatpush1.msra.mxu0 0.0
        %1514 = vmatprep.subr.mxu0 0.0
        %1515 = vmatpush1.msra.mxu0 0.0
        %1516 = vmatprep.subr.mxu0 0.0
        %1517 = vmatpush1.msra.mxu0 0.0
        %1518 = vmatprep.subr.mxu0 0.0
        %1519 = vmatpush1.msra.mxu0 0.0
        %1520 = vmatprep.subr.mxu0 0.0
        %1521 = vmatpush1.msra.mxu0 0.0
        %1522 = vmatprep.subr.mxu0 0.0
        %1523 = vmatpush1.msra.mxu0 0.0
        %1524 = vmatprep.subr.mxu0 0.0
        %1525 = vmatpush1.msra.mxu0 0.0
        %1526 = vmatprep.subr.mxu0 0.0
        %1527 = vmatpush1.msra.mxu0 0.0
        %1528 = vmatprep.subr.mxu0 0.0
        %1529 = vmatpush1.msra.mxu0 0.0
        %1530 = vmatprep.mubr.f32.mxu0 0.0
        %1531 = vmatmul.mubr.f32.gmra.mrb[0].mxu0 %v1464
        %v1532 = vpop.f32.mrb[0].mxu0
        %v1533 = vadd.f32 0.0, %v1532
        %v1534 = vpop.f32.mrb[0].mxu0
        %1535 = vdwg.mxu0
        %v1536 = vadd.f32 %v1293, %v1533
        %1537 = vrot.lane.b32.xlu0 %v646, 104
        %v1538 = vpop.permute.xlu0 %1537
        %1539 = vrot.lane.b32.xlu0 %v730, 104
        %v1540 = vpop.permute.xlu0 %1539
        %v1541 = vsel %vm818, %v1538, 0
        %v1543 = vsel %vm818, %v1540, 0
        %1545 = vmatprep.subr.mxu0 0.0
        %1546 = vmatpush1.xpose.msra.mxu0 %v1543
        %1547 = vmatprep.subr.mxu0 0.0
        %1548 = vmatpush1.xpose.msra.mxu0 0.0
        %1549 = vmatprep.subr.mxu0 0.0
        %1550 = vmatpush1.xpose.msra.mxu0 0.0
        %1551 = vmatprep.subr.mxu0 0.0
        %1552 = vmatpush1.xpose.msra.mxu0 0.0
        %1553 = vmatprep.subr.mxu0 0.0
        %1554 = vmatpush1.xpose.msra.mxu0 0.0
        %1555 = vmatprep.subr.mxu0 0.0
        %1556 = vmatpush1.xpose.msra.mxu0 0.0
        %1557 = vmatprep.subr.mxu0 0.0
        %1558 = vmatpush1.xpose.msra.mxu0 0.0
        %1559 = vmatprep.subr.mxu0 0.0
        %1560 = vmatpush1.xpose.msra.mxu0 0.0
        %1561 = vmatprep.subr.mxu0 0.0
        %1562 = vmatpush1.xpose.msra.mxu0 0.0
        %1563 = vmatprep.subr.mxu0 0.0
        %1564 = vmatpush1.xpose.msra.mxu0 0.0
        %1565 = vmatprep.subr.mxu0 0.0
        %1566 = vmatpush1.xpose.msra.mxu0 0.0
        %1567 = vmatprep.subr.mxu0 0.0
        %1568 = vmatpush1.xpose.msra.mxu0 0.0
        %1569 = vmatprep.subr.mxu0 0.0
        %1570 = vmatpush1.xpose.msra.mxu0 0.0
        %1571 = vmatprep.subr.mxu0 0.0
        %1572 = vmatpush1.xpose.msra.mxu0 0.0
        %1573 = vmatprep.subr.mxu0 0.0
        %1574 = vmatpush1.xpose.msra.mxu0 0.0
        %1575 = vmatprep.subr.mxu0 0.0
        %1576 = vmatpush1.xpose.msra.mxu0 0.0
        %1577 = vmatprep.subr.mxu0 0.0
        %1578 = vmatpush1.xpose.msra.mxu0 0.0
        %1579 = vmatprep.subr.mxu0 0.0
        %1580 = vmatpush1.xpose.msra.mxu0 0.0
        %1581 = vmatprep.subr.mxu0 0.0
        %1582 = vmatpush1.xpose.msra.mxu0 0.0
        %1583 = vmatprep.subr.mxu0 0.0
        %1584 = vmatpush1.xpose.msra.mxu0 0.0
        %1585 = vmatprep.subr.mxu0 0.0
        %1586 = vmatpush1.xpose.msra.mxu0 0.0
        %1587 = vmatprep.subr.mxu0 0.0
        %1588 = vmatpush1.xpose.msra.mxu0 0.0
        %1589 = vmatprep.subr.mxu0 0.0
        %1590 = vmatpush1.xpose.msra.mxu0 0.0
        %1591 = vmatprep.subr.mxu0 0.0
        %1592 = vmatpush1.xpose.msra.mxu0 0.0
        %1593 = vmatprep.subr.mxu0 0.0
        %1594 = vmatpush1.xpose.msra.mxu0 0.0
        %1595 = vmatprep.subr.mxu0 0.0
        %1596 = vmatpush1.xpose.msra.mxu0 0.0
        %1597 = vmatprep.subr.mxu0 0.0
        %1598 = vmatpush1.xpose.msra.mxu0 0.0
        %1599 = vmatprep.subr.mxu0 0.0
        %1600 = vmatpush1.xpose.msra.mxu0 0.0
        %1601 = vmatprep.subr.mxu0 0.0
        %1602 = vmatpush1.xpose.msra.mxu0 0.0
        %1603 = vmatprep.subr.mxu0 0.0
        %1604 = vmatpush1.xpose.msra.mxu0 0.0
        %1605 = vmatprep.subr.mxu0 0.0
        %1606 = vmatpush1.xpose.msra.mxu0 0.0
        %1607 = vmatprep.subr.mxu0 0.0
        %1608 = vmatpush1.xpose.msra.mxu0 0.0
        %1609 = vmatprep.mubr.f32.mxu0 0.0
        %1610 = vmatmul.mubr.f32.gmra.mrb[0].mxu0 %v1541
        %v1611 = vpop.f32.mrb[0].mxu0
        %v1612 = vadd.f32 0.0, %v1611
        %v1613 = vpop.f32.mrb[0].mxu0
        %1614 = vdwg.mxu0
        %v1615 = vmul.f32 %v1612, 0.35355338
        %v1616 = vsel %vm896, %v1615, -1e+09
        %v1617 = vsel %vm818, %v1616, -inf
        %1618 = vmax.xlane.f32.xlu0 %v1617
        %v1619 = vpop.xlane.xlu0 %1618
        %v1620 = vsub.f32 %v1616, %v1619
        %v1621 = vmul.f32 %v1620, 1.442695
        %v1622 = vpow.pop %v1621
        %v1623 = vsel %vm818, %v1622, 0.0
        %1624 = vadd.xlane.f32.xlu0 %v1623
        %v1625 = vpop.xlane.xlu0 %1624
        %v1626 = vrcp.pop %v1625
        %v1627 = vmul.f32 %v1622, %v1626
        %1628 = vrot.lane.b32.xlu0 %v811, 104
        %v1629 = vpop.permute.xlu0 %1628
        %v1632 = vsel %vm818, %v1627, 0
        %1634 = vmatprep.subr.mxu0 0.0
        %1635 = vmatpush1.msra.mxu0 %v1629
        %1636 = vmatprep.subr.mxu0 0.0
        %1637 = vmatpush1.msra.mxu0 0.0
        %1638 = vmatprep.subr.mxu0 0.0
        %1639 = vmatpush1.msra.mxu0 0.0
        %1640 = vmatprep.subr.mxu0 0.0
        %1641 = vmatpush1.msra.mxu0 0.0
        %1642 = vmatprep.subr.mxu0 0.0
        %1643 = vmatpush1.msra.mxu0 0.0
        %1644 = vmatprep.subr.mxu0 0.0
        %1645 = vmatpush1.msra.mxu0 0.0
        %1646 = vmatprep.subr.mxu0 0.0
        %1647 = vmatpush1.msra.mxu0 0.0
        %1648 = vmatprep.subr.mxu0 0.0
        %1649 = vmatpush1.msra.mxu0 0.0
        %1650 = vmatprep.subr.mxu0 0.0
        %1651 = vmatpush1.msra.mxu0 0.0
        %1652 = vmatprep.subr.mxu0 0.0
        %1653 = vmatpush1.msra.mxu0 0.0
        %1654 = vmatprep.subr.mxu0 0.0
        %1655 = vmatpush1.msra.mxu0 0.0
        %1656 = vmatprep.subr.mxu0 0.0
        %1657 = vmatpush1.msra.mxu0 0.0
        %1658 = vmatprep.subr.mxu0 0.0
        %1659 = vmatpush1.msra.mxu0 0.0
        %1660 = vmatprep.subr.mxu0 0.0
        %1661 = vmatpush1.msra.mxu0 0.0
        %1662 = vmatprep.subr.mxu0 0.0
        %1663 = vmatpush1.msra.mxu0 0.0
        %1664 = vmatprep.subr.mxu0 0.0
        %1665 = vmatpush1.msra.mxu0 0.0
        %1666 = vmatprep.subr.mxu0 0.0
        %1667 = vmatpush1.msra.mxu0 0.0
        %1668 = vmatprep.subr.mxu0 0.0
        %1669 = vmatpush1.msra.mxu0 0.0
        %1670 = vmatprep.subr.mxu0 0.0
        %1671 = vmatpush1.msra.mxu0 0.0
        %1672 = vmatprep.subr.mxu0 0.0
        %1673 = vmatpush1.msra.mxu0 0.0
        %1674 = vmatprep.subr.mxu0 0.0
        %1675 = vmatpush1.msra.mxu0 0.0
        %1676 = vmatprep.subr.mxu0 0.0
        %1677 = vmatpush1.msra.mxu0 0.0
        %1678 = vmatprep.subr.mxu0 0.0
        %1679 = vmatpush1.msra.mxu0 0.0
        %1680 = vmatprep.subr.mxu0 0.0
        %1681 = vmatpush1.msra.mxu0 0.0
        %1682 = vmatprep.subr.mxu0 0.0
        %1683 = vmatpush1.msra.mxu0 0.0
        %1684 = vmatprep.subr.mxu0 0.0
        %1685 = vmatpush1.msra.mxu0 0.0
        %1686 = vmatprep.subr.mxu0 0.0
        %1687 = vmatpush1.msra.mxu0 0.0
        %1688 = vmatprep.subr.mxu0 0.0
        %1689 = vmatpush1.msra.mxu0 0.0
        %1690 = vmatprep.subr.mxu0 0.0
        %1691 = vmatpush1.msra.mxu0 0.0
        %1692 = vmatprep.subr.mxu0 0.0
        %1693 = vmatpush1.msra.mxu0 0.0
        %1694 = vmatprep.subr.mxu0 0.0
        %1695 = vmatpush1.msra.mxu0 0.0
        %1696 = vmatprep.subr.mxu0 0.0
        %1697 = vmatpush1.msra.mxu0 0.0
        %1698 = vmatprep.mubr.f32.mxu0 0.0
        %1699 = vmatmul.mubr.f32.gmra.mrb[0].mxu0 %v1632
        %v1700 = vpop.f32.mrb[0].mxu0
        %v1701 = vadd.f32 0.0, %v1700
        %v1702 = vpop.f32.mrb[0].mxu0
        %1703 = vdwg.mxu0
        %v1705 = vsel %vm818, %v1701, 0
        %1707 = vmatprep.subr.mxu0 0.0
        %1708 = vmatpush1.msra.mxu0 %v817
        %1709 = vmatprep.subr.mxu0 0.0
        %1710 = vmatpush1.msra.mxu0 0.0
        %1711 = vmatprep.subr.mxu0 0.0
        %1712 = vmatpush1.msra.mxu0 0.0
        %1713 = vmatprep.subr.mxu0 0.0
        %1714 = vmatpush1.msra.mxu0 0.0
        %1715 = vmatprep.subr.mxu0 0.0
        %1716 = vmatpush1.msra.mxu0 0.0
        %1717 = vmatprep.subr.mxu0 0.0
        %1718 = vmatpush1.msra.mxu0 0.0
        %1719 = vmatprep.subr.mxu0 0.0
        %1720 = vmatpush1.msra.mxu0 0.0
        %1721 = vmatprep.subr.mxu0 0.0
        %1722 = vmatpush1.msra.mxu0 0.0
        %1723 = vmatprep.subr.mxu0 0.0
        %1724 = vmatpush1.msra.mxu0 0.0
        %1725 = vmatprep.subr.mxu0 0.0
        %1726 = vmatpush1.msra.mxu0 0.0
        %1727 = vmatprep.subr.mxu0 0.0
        %1728 = vmatpush1.msra.mxu0 0.0
        %1729 = vmatprep.subr.mxu0 0.0
        %1730 = vmatpush1.msra.mxu0 0.0
        %1731 = vmatprep.subr.mxu0 0.0
        %1732 = vmatpush1.msra.mxu0 0.0
        %1733 = vmatprep.subr.mxu0 0.0
        %1734 = vmatpush1.msra.mxu0 0.0
        %1735 = vmatprep.subr.mxu0 0.0
        %1736 = vmatpush1.msra.mxu0 0.0
        %1737 = vmatprep.subr.mxu0 0.0
        %1738 = vmatpush1.msra.mxu0 0.0
        %1739 = vmatprep.subr.mxu0 0.0
        %1740 = vmatpush1.msra.mxu0 0.0
        %1741 = vmatprep.subr.mxu0 0.0
        %1742 = vmatpush1.msra.mxu0 0.0
        %1743 = vmatprep.subr.mxu0 0.0
        %1744 = vmatpush1.msra.mxu0 0.0
        %1745 = vmatprep.subr.mxu0 0.0
        %1746 = vmatpush1.msra.mxu0 0.0
        %1747 = vmatprep.subr.mxu0 0.0
        %1748 = vmatpush1.msra.mxu0 0.0
        %1749 = vmatprep.subr.mxu0 0.0
        %1750 = vmatpush1.msra.mxu0 0.0
        %1751 = vmatprep.subr.mxu0 0.0
        %1752 = vmatpush1.msra.mxu0 0.0
        %1753 = vmatprep.subr.mxu0 0.0
        %1754 = vmatpush1.msra.mxu0 0.0
        %1755 = vmatprep.subr.mxu0 0.0
        %1756 = vmatpush1.msra.mxu0 0.0
        %1757 = vmatprep.subr.mxu0 0.0
        %1758 = vmatpush1.msra.mxu0 0.0
        %1759 = vmatprep.subr.mxu0 0.0
        %1760 = vmatpush1.msra.mxu0 0.0
        %1761 = vmatprep.subr.mxu0 0.0
        %1762 = vmatpush1.msra.mxu0 0.0
        %1763 = vmatprep.subr.mxu0 0.0
        %1764 = vmatpush1.msra.mxu0 0.0
        %1765 = vmatprep.subr.mxu0 0.0
        %1766 = vmatpush1.msra.mxu0 0.0
        %1767 = vmatprep.subr.mxu0 0.0
        %1768 = vmatpush1.msra.mxu0 0.0
        %1769 = vmatprep.subr.mxu0 0.0
        %1770 = vmatpush1.msra.mxu0 0.0
        %1771 = vmatprep.mubr.f32.mxu0 0.0
        %1772 = vmatmul.mubr.f32.gmra.mrb[0].mxu0 %v1705
        %v1773 = vpop.f32.mrb[0].mxu0
        %v1774 = vadd.f32 0.0, %v1773
        %v1775 = vpop.f32.mrb[0].mxu0
        %1776 = vdwg.mxu0
        %v1777 = vadd.f32 %v1536, %v1774
        %v1778 = vadd.f32 %v561, %v1777
        %v1779 = vld [vmem:[%s10] sm:$0x1]
        %v1781 = vlaneseq
        %v1782 = vshrl.u32 %v1781, 7
        %v1783 = vsub.s32 0, %v1782
        %v1784 = vrot.slane %v1779, %v1783
        %v1786 = vadd.f32 %v1778, %v1784
        %v1787 = vsel %vm575, %v1786, 0.0
        %1788 = vadd.xlane.f32.xlu0 %v1787
        %v1789 = vpop.xlane.xlu0 %1788
        %v1790 = vrcp.pop 32.0
        %v1791 = vmul.f32 %v1789, %v1790
        %v1792 = vsub.f32 %v1786, %v1791
        %v1793 = vmul.f32 %v1792, %v1792
        %v1794 = vsel %vm575, %v1793, 0.0
        %1795 = vadd.xlane.f32.xlu0 %v1794
        %v1796 = vpop.xlane.xlu0 %1795
        %v1797 = vmul.f32 %v1796, %v1790
        %v1798 = vadd.f32 %v1797, 1e-05
        %v1799 = vrsqrt.pop %v1798
        %v1800 = vmul.f32 %v1792, %v1799
        %v1801 = vld [vmem:[%s11] sm:$0x1]
        %v1803 = vlaneseq
        %v1804 = vshrl.u32 %v1803, 7
        %v1805 = vsub.s32 0, %v1804
        %v1806 = vrot.slane %v1801, %v1805
        %v1808 = vmul.f32 %v1800, %v1806
        %v1809 = vld [vmem:[%s12] sm:$0x1]
        %v1811 = vlaneseq
        %v1812 = vshrl.u32 %v1811, 7
        %v1813 = vsub.s32 0, %v1812
        %v1814 = vrot.slane %v1809, %v1813
        %v1816 = vadd.f32 %v1808, %v1814
        %1817 = vst.msk [vmem:[%s560] sm:$0xff] %vm575, %v1816
        %s1818 = sand.u32 %s326, 1
        %s1819 = scalar_lea.sflag [#allocation4], %s1818
        %s1820 = sand.u32 %s326, 1
        %s1821 = smul.addr %s1820, 8
        %s1822 = scalar_lea.vmem [#allocation14], %s1821
        // Predicated region
        $region101: #{tpu_custom_call.1} parent=71 // pred_check
          %p1823 = pneg %p336
        $region102: #{tpu_custom_call.1} parent=71 // pred_check_branch
          %1825 = sbr.rel (%p1823) target = $region104
        $region103: #{tpu_custom_call.1} parent=71 // pred_region
          %s1827 = ssub.s32 128, 128
          %1828 = vsyncadd %s1819, %s1827
          %s1829 = smul.addr %s35, 128
          %s1830 = scalar_lea.hbm %s13, %s1829
          %s1832 = sshll.u32 %s1822, 4
          %s1833 = int_to_ptr.vmem [resolvable:$true] %s1832
          %1835 = dma.vmem_to_hbm [thread:$0]  %s1833, 128, %s1830, %s1819
        $region104: #{tpu_custom_call.1} parent=71 // pred_fallthru
          _
      $region72: #{tpu_custom_call.1} parent=5 // pred_fallthru
        _
      %p1836 = scmp.le.s32.totalorder 2, %s30
      // Predicated region
      $region105: #{tpu_custom_call.1} parent=5 // pred_check
        %p1837 = pneg %p1836
      $region106: #{tpu_custom_call.1} parent=5 // pred_check_branch
        %1839 = sbr.rel (%p1837) target = $region108
      $region107: #{tpu_custom_call.1} parent=5 // pred_region
        %s1840 = ssub.s32 %s30, 2
        // Predicated region
        $region109: #{tpu_custom_call.1} parent=107 // pred_check
          %p1841 = pneg %p342
        $region110: #{tpu_custom_call.1} parent=107 // pred_check_branch
          %1843 = sbr.rel (%p1841) target = $region112
        $region111: #{tpu_custom_call.1} parent=107 // pred_region
          %s1844 = sand.u32 %s327, 1
          %s1845 = scalar_lea.sflag [#allocation4], %s1844
          %s1846 = sand.u32 %s327, 1
          %s1847 = smul.addr %s1846, 8
          %s1848 = scalar_lea.vmem [#allocation14], %s1847
          %1849 = dma.done %s1845, 128
        $region112: #{tpu_custom_call.1} parent=107 // pred_fallthru
          _
      $region108: #{tpu_custom_call.1} parent=5 // pred_fallthru
        _
    $region6: #{tpu_custom_call.1} parent=1 // loop_footer
      %s34 = sadd.s32 1, %s30
    $region7: #{tpu_custom_call.1} parent=1 // loop_footer_branch
      %29 = sbr.rel target = $region3
    $region8: #{tpu_custom_call.1} parent=1 // loop_exit
      _
    %1850 = vsyncpa [#allocation3], 1
    %s1851 = scalar_lea.sflag [#allocation3], 1
    %1852 = vsyncpa %s1851, 1
    %1853 = vsyncpa [#allocation6], 1
    %s1854 = scalar_lea.sflag [#allocation6], 1
    %1855 = vsyncpa %s1854, 1
    %1856 = vsyncpa [#allocation9], 1
    %1857 = vsyncpa [#allocation12], 1
    %1858 = vsyncpa [#allocation4], 1
    %s1859 = scalar_lea.sflag [#allocation4], 1
    %1860 = vsyncpa %s1859, 1

</llo_original>
